<compile_context>
chip_gen: v7x
topology: tpu7x:2x2x1
jax: 0.10.0
libtpu: 0.0.40
codegen_flags: <defaults>
</compile_context>

<pallas_src>
import math
from functools import partial

import jax
import jax.numpy as jnp
from jax import lax
from jax.experimental import pallas as pl
from jax.experimental.pallas import tpu as pltpu

LANE = 128
NUM_W = 12   # stacked [dp, dp] weight matrices
NUM_B = 16   # stacked [dp] bias / scale vectors

# weight-slab indices
(W_E2,
 W_L0, W_L1, W_L2, W_LS,
 W_G0, W_G1, W_G2, W_GS,
 W_P0, W_P1, W_P2) = range(NUM_W)
# bias-slab indices
(B_E1, B_E2, B_EG, B_BNW, B_BNB,
 B_L0, B_L1, B_L2, B_LS,
 B_G0, B_G1, B_G2, B_GS,
 B_P0, B_P1, B_P2) = range(NUM_B)


# ----------------------------- small helpers --------------------------------

def _relu(x):
    return jnp.maximum(x, 0.0)


def _softplus(x):
    # numerically-stable softplus using only basic jnp ops (kernel-safe)
    return jnp.maximum(x, 0.0) + jnp.log1p(jnp.exp(-jnp.abs(x)))


def _round_up(v, m):
    return ((v + m - 1) // m) * m


def _pad2(a, rows, cols, dtype=jnp.float32):
    a = jnp.asarray(a)
    out = jnp.zeros((rows, cols), dtype)
    return out.at[: a.shape[0], : a.shape[1]].set(a.astype(dtype))


def _pad_vec(v, cols):
    v = jnp.asarray(v, jnp.float32).reshape(-1)
    out = jnp.zeros((cols,), jnp.float32)
    return out.at[: v.shape[0]].set(v)


# ------------------------------ fused kernel ---------------------------------

def _fused_kernel(
    # SMEM scalar
    eps_ref,
    # VMEM tensors
    x_ref, adj_ref, pmt_ref, prior_ref, e_w1_ref, w_ref, b_ref,
    # output
    out_ref,
    *, num_nodes, num_graphs, gamma, use_prior,
):
    f32 = jnp.float32
    bf16 = jnp.bfloat16

    eps = eps_ref[0]
    x_bf = x_ref[...]            # [N, FP]  bf16
    adj_bf = adj_ref[...]        # [N, N]   bf16 (0/1, exact)
    pmt = pmt_ref[...]           # [B, N]   f32 one-hot membership, pre-transposed, unpadded
    w = w_ref                    # [NUM_W, DP, DP] bf16 (static ref slices below)
    b = b_ref                    # [NUM_B, DP]     f32

    def mm(a, rhs_bf):           # bf16 MXU matmul with f32 accumulation
        return jnp.dot(a.astype(bf16), rhs_bf, preferred_element_type=f32)

    # ---- Encoder: DenseGINConv (Linear-ReLU-Linear-ReLU, + bias, ReLU) ----
    agg = (1.0 + eps) * x_bf.astype(f32) + jnp.dot(
        adj_bf, x_bf, preferred_element_type=f32)
    h = _relu(mm(agg, e_w1_ref[...]) + b[B_E1])
    h = _relu(mm(h, w[W_E2]) + b[B_E2])
    h = _relu(h + b[B_EG])       # GIN bias + ReLU (outer F.relu is idempotent)

    # ---- BatchNorm1d (training-mode batch stats, biased variance, eps=1e-5) ----
    mean = jnp.mean(h, axis=0, keepdims=True)
    var = jnp.mean((h - mean) * (h - mean), axis=0, keepdims=True)
    m_nodes = (h - mean) * lax.rsqrt(var + 1e-5) * b[B_BNW] + b[B_BNB]   # [N, DP] f32

    # ---- global_add_pool: y = pmask^T @ M  (pre-transposed, lane-dense) ----
    m_bf = m_nodes.astype(bf16)
    y = jnp.dot(pmt.astype(bf16), m_bf, preferred_element_type=f32)      # [B, DP] f32

    # ---- FF residual MLP heads ----
    def ff(z_f32, i0, i1, i2, ish, j0, j1, j2, jsh):
        z_bf = z_f32.astype(bf16)
        t = _relu(jnp.dot(z_bf, w[i0], preferred_element_type=f32) + b[j0])
        t = _relu(mm(t, w[i1]) + b[j1])
        t = _relu(mm(t, w[i2]) + b[j2])
        return t + jnp.dot(z_bf, w[ish], preferred_element_type=f32) + b[jsh]

    g_enc = ff(y, W_G0, W_G1, W_G2, W_GS, B_G0, B_G1, B_G2, B_GS)        # [B, DP]
    l_enc = ff(m_nodes, W_L0, W_L1, W_L2, W_LS, B_L0, B_L1, B_L2, B_LS)  # [N, DP]

    # ---- JSD local/global loss in [B, N] orientation ----
    res = lax.dot_general(g_enc.astype(bf16), l_enc.astype(bf16),
                          dimension_numbers=(((1,), (1,)), ((), ())),
                          preferred_element_type=f32)                    # [B, N]
    log2 = math.log(2.0)
    sp = _softplus(-res)                          # computed once, shared pos/neg
    e_pos = jnp.sum(pmt * (log2 - sp), keepdims=True)                    # (1, 1)
    e_neg = jnp.sum((1.0 - pmt) * (sp + res - log2), keepdims=True)      # (1, 1)
    loss = (e_neg / float(num_nodes * (num_graphs - 1))
            - e_pos / float(num_nodes))

    # ---- prior discriminator: single stacked pass over [prior; y] ----
    if use_prior:
        zin = jnp.concatenate([prior_ref[...], y], axis=0)               # [2B, DP] f32
        t = _relu(mm(zin, w[W_P0]) + b[B_P0])
        t = _relu(mm(t, w[W_P1]) + b[B_P1])
        z = mm(t, w[W_P2]) + b[B_P2]                                     # [2B, DP]; lane 0 is the real head
        row = lax.broadcasted_iota(jnp.int32, z.shape, 0)
        lane0 = (lax.broadcasted_iota(jnp.int32, z.shape, 1) == 0).astype(f32)
        # log(sigmoid(z)) = -softplus(-z) ; log(1 - sigmoid(z)) = -softplus(z)
        signed = jnp.where(row < num_graphs, -z, z)
        prior_sum = jnp.sum(lane0 * _softplus(signed), keepdims=True)    # (1, 1)
        loss = loss + gamma * prior_sum / float(num_graphs)

    out_ref[...] = loss


# ------------------------------ forward wrapper -------------------------------

def gcn_infomax_forward(params, x, adj, pmask, key, *, gamma=0.1, prior=True):
    assert len(params["encoder"]) == 1, "module is only shape-consistent for num_gc_layers == 1"
    n, f = x.shape
    b_graphs = pmask.shape[1]
    assert b_graphs >= 2, "JSD negative-pair normalizer requires num_graphs > 1"
    d = params["encoder"][0]["w1"].shape[1]
    fp = _round_up(max(f, LANE), LANE)   # padded feature lanes
    dp = _round_up(max(d, LANE), LANE)   # padded embedding lanes
    # TODO(synk): pad contraction dims to 256 on v6e/v7x once d grows past 128
    # (their MXU is 256 deep; 128-deep operands only half-fill it).

    ep = params["encoder"][0]
    ld, gd = params["local_d"], params["global_d"]
    pd = params.get("prior_d") if prior else None

    bf16 = jnp.bfloat16
    zero_w = jnp.zeros((dp, dp), bf16)
    zero_b = jnp.zeros((dp,), jnp.float32)

    def pw(a):
        return _pad2(a, dp, dp, bf16)

    # one packed bf16 weight slab (one DMA) + one packed f32 bias slab (one DMA)
    w_slab = jnp.stack([
        pw(ep["w2"]),
        pw(ld["w0"]), pw(ld["w1"]), pw(ld["w2"]), pw(ld["ws"]),
        pw(gd["w0"]), pw(gd["w1"]), pw(gd["w2"]), pw(gd["ws"]),
        pw(pd["w0"]) if pd else zero_w,
        pw(pd["w1"]) if pd else zero_w,
        pw(pd["w2"]) if pd else zero_w,
    ], axis=0)                                                    # [NUM_W, dp, dp]

    b_slab = jnp.stack([
        _pad_vec(ep["b1"], dp), _pad_vec(ep["b2"], dp), _pad_vec(ep["gin_bias"], dp),
        _pad_vec(ep["bn_w"], dp), _pad_vec(ep["bn_b"], dp),
        _pad_vec(ld["b0"], dp), _pad_vec(ld["b1"], dp), _pad_vec(ld["b2"], dp), _pad_vec(ld["bs"], dp),
        _pad_vec(gd["b0"], dp), _pad_vec(gd["b1"], dp), _pad_vec(gd["b2"], dp), _pad_vec(gd["bs"], dp),
        _pad_vec(pd["b0"], dp) if pd else zero_b,
        _pad_vec(pd["b1"], dp) if pd else zero_b,
        _pad_vec(pd["b2"], dp) if pd else zero_b,
    ], axis=0)                                                    # [NUM_B, dp]

    # prior noise (torch.rand_like(y)) generated wrapper-side: the in-kernel
    # pltpu PRNG has no CPU/interpret lowering and is unnecessary here.
    noise = jax.random.uniform(key, (b_graphs, d), jnp.float32)
    prior_pad = _pad2(noise, b_graphs, dp, jnp.float32)

    args = [
        jnp.asarray(ep["eps"], jnp.float32).reshape(1),           # SMEM eps
        _pad2(x, n, fp, bf16),                                    # [N, fp]  bf16
        jnp.asarray(adj, jnp.float32).astype(bf16),               # [N, N]   bf16
        jnp.asarray(pmask, jnp.float32).T,                        # [B, N]   f32 (pre-transposed, unpadded)
        prior_pad,                                                # [B, dp]  f32
        _pad2(ep["w1"], fp, dp, bf16),                            # [fp, dp] bf16
        w_slab,                                                   # [12, dp, dp] bf16
        b_slab,                                                   # [16, dp] f32
    ]

    in_specs = ([pl.BlockSpec(memory_space=pltpu.MemorySpace.SMEM)]
                + [pl.BlockSpec(memory_space=pltpu.MemorySpace.VMEM)] * (len(args) - 1))

    kernel = partial(_fused_kernel, num_nodes=n, num_graphs=b_graphs,
                     gamma=float(gamma), use_prior=bool(prior))

    flops = 2 * (n * n * fp + n * fp * dp + 5 * n * dp * dp
                 + 4 * b_graphs * dp * dp + 2 * b_graphs * n * dp
                 + 6 * b_graphs * dp * dp)
    bytes_accessed = sum(int(a.size) * a.dtype.itemsize for a in args) + 4
    cost = pl.CostEstimate(flops=int(flops),
                           transcendentals=int(2 * b_graphs * n + 2 * b_graphs * dp),
                           bytes_accessed=int(bytes_accessed))

    loss = pl.pallas_call(
        kernel,
        out_shape=jax.ShapeDtypeStruct((1, 1), jnp.float32),
        in_specs=in_specs,
        out_specs=pl.BlockSpec(memory_space=pltpu.MemorySpace.VMEM),
        cost_estimate=cost,
    )(*args)
    return loss[0, 0]


# ------------------------------ parameter init --------------------------------

def xavier_uniform(key, fan_in, fan_out):
    bound = math.sqrt(6.0 / (fan_in + fan_out))
    return jax.random.uniform(key, (fan_in, fan_out), jnp.float32, -bound, bound)


def init_params(key, num_features, hidden_dim, num_gc_layers):
    d = hidden_dim * num_gc_layers          # embedding_dim; Encoder layer width
    keys = iter(jax.random.split(key, 64))

    def ff_params():
        return {
            "w0": xavier_uniform(next(keys), d, d), "b0": jnp.zeros((1, d), jnp.float32),
            "w1": xavier_uniform(next(keys), d, d), "b1": jnp.zeros((1, d), jnp.float32),
            "w2": xavier_uniform(next(keys), d, d), "b2": jnp.zeros((1, d), jnp.float32),
            "ws": xavier_uniform(next(keys), d, d), "bs": jnp.zeros((1, d), jnp.float32),
        }

    encoder = []
    for i in range(num_gc_layers):
        fin = num_features if i == 0 else d
        encoder.append({
            "eps": jnp.zeros((1,), jnp.float32),
            "w1": xavier_uniform(next(keys), fin, d), "b1": jnp.zeros((1, d), jnp.float32),
            "w2": xavier_uniform(next(keys), d, d), "b2": jnp.zeros((1, d), jnp.float32),
            "gin_bias": jnp.zeros((1, d), jnp.float32),
            "bn_w": jnp.ones((1, d), jnp.float32),
            "bn_b": jnp.zeros((1, d), jnp.float32),
        })

    prior_d = {
        "w0": xavier_uniform(next(keys), d, d), "b0": jnp.zeros((1, d), jnp.float32),
        "w1": xavier_uniform(next(keys), d, d), "b1": jnp.zeros((1, d), jnp.float32),
        "w2": xavier_uniform(next(keys), d, 1), "b2": jnp.zeros((1, 1), jnp.float32),
    }

    return {"encoder": encoder, "local_d": ff_params(), "global_d": ff_params(),
            "prior_d": prior_d}


# ---------------------------------- main ---------------------------------------

if __name__ == "__main__":
    hidden_dim = 16
    num_gc_layers = 1      # original module is only shape-consistent for L == 1
    num_features = 8
    num_nodes = 64
    num_graphs = 4

    root = jax.random.PRNGKey(0)
    k_params, k_x, k_adj, k_prior = jax.random.split(root, 4)

    params = init_params(k_params, num_features, hidden_dim, num_gc_layers)

    # node features
    x = jax.random.normal(k_x, (num_nodes, num_features), jnp.float32)

    # graph membership: num_graphs graphs of equal size; one-hot pooling matrix
    batch = jnp.repeat(jnp.arange(num_graphs), num_nodes // num_graphs)
    pmask = jax.nn.one_hot(batch, num_graphs, dtype=jnp.float32)     # [N, B]

    # dense adjacency (edges only inside each graph), values == 1.0
    same_graph = (batch[:, None] == batch[None, :]).astype(jnp.float32)
    rand_edges = (jax.random.uniform(k_adj, (num_nodes, num_nodes)) < 0.3)
    adj = rand_edges.astype(jnp.float32) * same_graph                # [N, N]

    loss_fn = jax.jit(partial(gcn_infomax_forward, gamma=0.1, prior=True))
    loss = loss_fn(params, x, adj, pmask, k_prior)
    loss = jax.block_until_ready(loss)
    assert jnp.isfinite(loss)
    print("KERNEL_OK")
</pallas_src>

<mosaic_0001>
module attributes {stable_mosaic.version = 11 : i64} {
  func.func @_fused_kernel(%arg0: memref<1xf32, #tpu.memory_space<smem>>, %arg1: memref<64x128xbf16, #tpu.memory_space<vmem>>, %arg2: memref<64x64xbf16, #tpu.memory_space<vmem>>, %arg3: memref<4x64xf32, #tpu.memory_space<vmem>>, %arg4: memref<4x128xf32, #tpu.memory_space<vmem>>, %arg5: memref<128x128xbf16, #tpu.memory_space<vmem>>, %arg6: memref<12x128x128xbf16, #tpu.memory_space<vmem>>, %arg7: memref<16x128xf32, #tpu.memory_space<vmem>>, %arg8: memref<1x1xf32, #tpu.memory_space<vmem>>) attributes {dimension_semantics = [], scalar_prefetch = 0 : i64, scratch_operands = 0 : i64, tpu.core_type = #tpu.core_type<tc>} {
    %c0 = arith.constant 0 : index
    %0 = memref.load %arg0[%c0] : memref<1xf32, #tpu.memory_space<smem>>
    %c0_0 = arith.constant 0 : index
    %c0_1 = arith.constant 0 : index
    %1 = vector.load %arg1[%c0_0, %c0_1] : memref<64x128xbf16, #tpu.memory_space<vmem>>, vector<64x128xbf16>
    %c0_2 = arith.constant 0 : index
    %c0_3 = arith.constant 0 : index
    %2 = vector.load %arg2[%c0_2, %c0_3] : memref<64x64xbf16, #tpu.memory_space<vmem>>, vector<64x64xbf16>
    %c0_4 = arith.constant 0 : index
    %c0_5 = arith.constant 0 : index
    %3 = vector.load %arg3[%c0_4, %c0_5] : memref<4x64xf32, #tpu.memory_space<vmem>>, vector<4x64xf32>
    %cst = arith.constant 1.000000e+00 : f32
    %4 = arith.addf %cst, %0 : f32
    %5 = arith.extf %1 : vector<64x128xbf16> to vector<64x128xf32>
    %6 = vector.broadcast %4 : f32 to vector<64x128xf32>
    %7 = arith.mulf %6, %5 : vector<64x128xf32>
    %cst_6 = arith.constant dense<0.000000e+00> : vector<64x128xf32>
    %8 = tpu.matmul %2, %1, %cst_6 {dimension_numbers = #tpu.dot_dimension_numbers<[1], [0], [0], [1], [0, 0, 1, 1], [], []>} : vector<64x64xbf16>, vector<64x128xbf16>, vector<64x128xf32> -> vector<64x128xf32>
    %9 = arith.addf %7, %8 : vector<64x128xf32>
    %c0_7 = arith.constant 0 : index
    %c0_8 = arith.constant 0 : index
    %10 = vector.load %arg5[%c0_7, %c0_8] : memref<128x128xbf16, #tpu.memory_space<vmem>>, vector<128x128xbf16>
    %11 = arith.truncf %9 : vector<64x128xf32> to vector<64x128xbf16>
    %cst_9 = arith.constant dense<0.000000e+00> : vector<64x128xf32>
    %12 = tpu.matmul %11, %10, %cst_9 {dimension_numbers = #tpu.dot_dimension_numbers<[1], [0], [0], [1], [0, 0, 1, 1], [], []>} : vector<64x128xbf16>, vector<128x128xbf16>, vector<64x128xf32> -> vector<64x128xf32>
    %c0_10 = arith.constant 0 : index
    %c0_11 = arith.constant 0 : index
    %13 = vector.load %arg7[%c0_10, %c0_11] : memref<16x128xf32, #tpu.memory_space<vmem>>, vector<1x128xf32>
    %14 = vector.shape_cast %13 : vector<1x128xf32> to vector<128xf32>
    %15 = vector.shape_cast %14 : vector<128xf32> to vector<1x128xf32>
    %16 = vector.broadcast %15 : vector<1x128xf32> to vector<64x128xf32>
    %17 = arith.addf %12, %16 : vector<64x128xf32>
    %cst_12 = arith.constant 0.000000e+00 : f32
    %18 = vector.broadcast %cst_12 : f32 to vector<64x128xf32>
    %19 = arith.maximumf %17, %18 : vector<64x128xf32>
    %c0_13 = arith.constant 0 : index
    %c0_14 = arith.constant 0 : index
    %c0_15 = arith.constant 0 : index
    %20 = vector.load %arg6[%c0_13, %c0_14, %c0_15] : memref<12x128x128xbf16, #tpu.memory_space<vmem>>, vector<1x128x128xbf16>
    %21 = vector.shape_cast %20 : vector<1x128x128xbf16> to vector<128x128xbf16>
    %22 = arith.truncf %19 : vector<64x128xf32> to vector<64x128xbf16>
    %cst_16 = arith.constant dense<0.000000e+00> : vector<64x128xf32>
    %23 = tpu.matmul %22, %21, %cst_16 {dimension_numbers = #tpu.dot_dimension_numbers<[1], [0], [0], [1], [0, 0, 1, 1], [], []>} : vector<64x128xbf16>, vector<128x128xbf16>, vector<64x128xf32> -> vector<64x128xf32>
    %c1 = arith.constant 1 : index
    %c0_17 = arith.constant 0 : index
    %24 = vector.load %arg7[%c1, %c0_17] : memref<16x128xf32, #tpu.memory_space<vmem>>, vector<1x128xf32>
    %25 = vector.shape_cast %24 : vector<1x128xf32> to vector<128xf32>
    %26 = vector.shape_cast %25 : vector<128xf32> to vector<1x128xf32>
    %27 = vector.broadcast %26 : vector<1x128xf32> to vector<64x128xf32>
    %28 = arith.addf %23, %27 : vector<64x128xf32>
    %cst_18 = arith.constant 0.000000e+00 : f32
    %29 = vector.broadcast %cst_18 : f32 to vector<64x128xf32>
    %30 = arith.maximumf %28, %29 : vector<64x128xf32>
    %c2 = arith.constant 2 : index
    %c0_19 = arith.constant 0 : index
    %31 = vector.load %arg7[%c2, %c0_19] : memref<16x128xf32, #tpu.memory_space<vmem>>, vector<1x128xf32>
    %32 = vector.shape_cast %31 : vector<1x128xf32> to vector<128xf32>
    %33 = vector.shape_cast %32 : vector<128xf32> to vector<1x128xf32>
    %34 = vector.broadcast %33 : vector<1x128xf32> to vector<64x128xf32>
    %35 = arith.addf %30, %34 : vector<64x128xf32>
    %cst_20 = arith.constant 0.000000e+00 : f32
    %36 = vector.broadcast %cst_20 : f32 to vector<64x128xf32>
    %37 = arith.maximumf %35, %36 : vector<64x128xf32>
    %cst_21 = arith.constant dense<0.000000e+00> : vector<128xf32>
    %38 = vector.multi_reduction <add>, %37, %cst_21 [0] : vector<64x128xf32> to vector<128xf32>
    %39 = vector.shape_cast %38 : vector<128xf32> to vector<1x128xf32>
    %cst_22 = arith.constant 6.400000e+01 : f32
    %40 = vector.broadcast %cst_22 : f32 to vector<1x128xf32>
    %41 = arith.divf %39, %40 : vector<1x128xf32>
    %42 = vector.broadcast %41 : vector<1x128xf32> to vector<64x128xf32>
    %43 = arith.subf %37, %42 : vector<64x128xf32>
    %44 = vector.broadcast %41 : vector<1x128xf32> to vector<64x128xf32>
    %45 = arith.subf %37, %44 : vector<64x128xf32>
    %46 = arith.mulf %43, %45 : vector<64x128xf32>
    %cst_23 = arith.constant dense<0.000000e+00> : vector<128xf32>
    %47 = vector.multi_reduction <add>, %46, %cst_23 [0] : vector<64x128xf32> to vector<128xf32>
    %48 = vector.shape_cast %47 : vector<128xf32> to vector<1x128xf32>
    %cst_24 = arith.constant 6.400000e+01 : f32
    %49 = vector.broadcast %cst_24 : f32 to vector<1x128xf32>
    %50 = arith.divf %48, %49 : vector<1x128xf32>
    %51 = vector.broadcast %41 : vector<1x128xf32> to vector<64x128xf32>
    %52 = arith.subf %37, %51 : vector<64x128xf32>
    %cst_25 = arith.constant 9.99999974E-6 : f32
    %53 = vector.broadcast %cst_25 : f32 to vector<1x128xf32>
    %54 = arith.addf %50, %53 : vector<1x128xf32>
    %55 = math.rsqrt %54 : vector<1x128xf32>
    %56 = vector.broadcast %55 : vector<1x128xf32> to vector<64x128xf32>
    %57 = arith.mulf %52, %56 : vector<64x128xf32>
    %c3 = arith.constant 3 : index
    %c0_26 = arith.constant 0 : index
    %58 = vector.load %arg7[%c3, %c0_26] : memref<16x128xf32, #tpu.memory_space<vmem>>, vector<1x128xf32>
    %59 = vector.shape_cast %58 : vector<1x128xf32> to vector<128xf32>
    %60 = vector.shape_cast %59 : vector<128xf32> to vector<1x128xf32>
    %61 = vector.broadcast %60 : vector<1x128xf32> to vector<64x128xf32>
    %62 = arith.mulf %57, %61 : vector<64x128xf32>
    %c4 = arith.constant 4 : index
    %c0_27 = arith.constant 0 : index
    %63 = vector.load %arg7[%c4, %c0_27] : memref<16x128xf32, #tpu.memory_space<vmem>>, vector<1x128xf32>
    %64 = vector.shape_cast %63 : vector<1x128xf32> to vector<128xf32>
    %65 = vector.shape_cast %64 : vector<128xf32> to vector<1x128xf32>
    %66 = vector.broadcast %65 : vector<1x128xf32> to vector<64x128xf32>
    %67 = arith.addf %62, %66 : vector<64x128xf32>
    %68 = arith.truncf %67 : vector<64x128xf32> to vector<64x128xbf16>
    %69 = arith.truncf %3 : vector<4x64xf32> to vector<4x64xbf16>
    %cst_28 = arith.constant dense<0.000000e+00> : vector<4x128xf32>
    %70 = tpu.matmul %69, %68, %cst_28 {dimension_numbers = #tpu.dot_dimension_numbers<[1], [0], [0], [1], [0, 0, 1, 1], [], []>} : vector<4x64xbf16>, vector<64x128xbf16>, vector<4x128xf32> -> vector<4x128xf32>
    %71 = arith.truncf %70 : vector<4x128xf32> to vector<4x128xbf16>
    %c5 = arith.constant 5 : index
    %c0_29 = arith.constant 0 : index
    %c0_30 = arith.constant 0 : index
    %72 = vector.load %arg6[%c5, %c0_29, %c0_30] : memref<12x128x128xbf16, #tpu.memory_space<vmem>>, vector<1x128x128xbf16>
    %73 = vector.shape_cast %72 : vector<1x128x128xbf16> to vector<128x128xbf16>
    %cst_31 = arith.constant dense<0.000000e+00> : vector<4x128xf32>
    %74 = tpu.matmul %71, %73, %cst_31 {dimension_numbers = #tpu.dot_dimension_numbers<[1], [0], [0], [1], [0, 0, 1, 1], [], []>} : vector<4x128xbf16>, vector<128x128xbf16>, vector<4x128xf32> -> vector<4x128xf32>
    %c9 = arith.constant 9 : index
    %c0_32 = arith.constant 0 : index
    %75 = vector.load %arg7[%c9, %c0_32] : memref<16x128xf32, #tpu.memory_space<vmem>>, vector<1x128xf32>
    %76 = vector.shape_cast %75 : vector<1x128xf32> to vector<128xf32>
    %77 = vector.shape_cast %76 : vector<128xf32> to vector<1x128xf32>
    %78 = vector.broadcast %77 : vector<1x128xf32> to vector<4x128xf32>
    %79 = arith.addf %74, %78 : vector<4x128xf32>
    %cst_33 = arith.constant 0.000000e+00 : f32
    %80 = vector.broadcast %cst_33 : f32 to vector<4x128xf32>
    %81 = arith.maximumf %79, %80 : vector<4x128xf32>
    %c6 = arith.constant 6 : index
    %c0_34 = arith.constant 0 : index
    %c0_35 = arith.constant 0 : index
    %82 = vector.load %arg6[%c6, %c0_34, %c0_35] : memref<12x128x128xbf16, #tpu.memory_space<vmem>>, vector<1x128x128xbf16>
    %83 = vector.shape_cast %82 : vector<1x128x128xbf16> to vector<128x128xbf16>
    %84 = arith.truncf %81 : vector<4x128xf32> to vector<4x128xbf16>
    %cst_36 = arith.constant dense<0.000000e+00> : vector<4x128xf32>
    %85 = tpu.matmul %84, %83, %cst_36 {dimension_numbers = #tpu.dot_dimension_numbers<[1], [0], [0], [1], [0, 0, 1, 1], [], []>} : vector<4x128xbf16>, vector<128x128xbf16>, vector<4x128xf32> -> vector<4x128xf32>
    %c10 = arith.constant 10 : index
    %c0_37 = arith.constant 0 : index
    %86 = vector.load %arg7[%c10, %c0_37] : memref<16x128xf32, #tpu.memory_space<vmem>>, vector<1x128xf32>
    %87 = vector.shape_cast %86 : vector<1x128xf32> to vector<128xf32>
    %88 = vector.shape_cast %87 : vector<128xf32> to vector<1x128xf32>
    %89 = vector.broadcast %88 : vector<1x128xf32> to vector<4x128xf32>
    %90 = arith.addf %85, %89 : vector<4x128xf32>
    %cst_38 = arith.constant 0.000000e+00 : f32
    %91 = vector.broadcast %cst_38 : f32 to vector<4x128xf32>
    %92 = arith.maximumf %90, %91 : vector<4x128xf32>
    %c7 = arith.constant 7 : index
    %c0_39 = arith.constant 0 : index
    %c0_40 = arith.constant 0 : index
    %93 = vector.load %arg6[%c7, %c0_39, %c0_40] : memref<12x128x128xbf16, #tpu.memory_space<vmem>>, vector<1x128x128xbf16>
    %94 = vector.shape_cast %93 : vector<1x128x128xbf16> to vector<128x128xbf16>
    %95 = arith.truncf %92 : vector<4x128xf32> to vector<4x128xbf16>
    %cst_41 = arith.constant dense<0.000000e+00> : vector<4x128xf32>
    %96 = tpu.matmul %95, %94, %cst_41 {dimension_numbers = #tpu.dot_dimension_numbers<[1], [0], [0], [1], [0, 0, 1, 1], [], []>} : vector<4x128xbf16>, vector<128x128xbf16>, vector<4x128xf32> -> vector<4x128xf32>
    %c11 = arith.constant 11 : index
    %c0_42 = arith.constant 0 : index
    %97 = vector.load %arg7[%c11, %c0_42] : memref<16x128xf32, #tpu.memory_space<vmem>>, vector<1x128xf32>
    %98 = vector.shape_cast %97 : vector<1x128xf32> to vector<128xf32>
    %99 = vector.shape_cast %98 : vector<128xf32> to vector<1x128xf32>
    %100 = vector.broadcast %99 : vector<1x128xf32> to vector<4x128xf32>
    %101 = arith.addf %96, %100 : vector<4x128xf32>
    %cst_43 = arith.constant 0.000000e+00 : f32
    %102 = vector.broadcast %cst_43 : f32 to vector<4x128xf32>
    %103 = arith.maximumf %101, %102 : vector<4x128xf32>
    %c8 = arith.constant 8 : index
    %c0_44 = arith.constant 0 : index
    %c0_45 = arith.constant 0 : index
    %104 = vector.load %arg6[%c8, %c0_44, %c0_45] : memref<12x128x128xbf16, #tpu.memory_space<vmem>>, vector<1x128x128xbf16>
    %105 = vector.shape_cast %104 : vector<1x128x128xbf16> to vector<128x128xbf16>
    %cst_46 = arith.constant dense<0.000000e+00> : vector<4x128xf32>
    %106 = tpu.matmul %71, %105, %cst_46 {dimension_numbers = #tpu.dot_dimension_numbers<[1], [0], [0], [1], [0, 0, 1, 1], [], []>} : vector<4x128xbf16>, vector<128x128xbf16>, vector<4x128xf32> -> vector<4x128xf32>
    %107 = arith.addf %103, %106 : vector<4x128xf32>
    %c12 = arith.constant 12 : index
    %c0_47 = arith.constant 0 : index
    %108 = vector.load %arg7[%c12, %c0_47] : memref<16x128xf32, #tpu.memory_space<vmem>>, vector<1x128xf32>
    %109 = vector.shape_cast %108 : vector<1x128xf32> to vector<128xf32>
    %110 = vector.shape_cast %109 : vector<128xf32> to vector<1x128xf32>
    %111 = vector.broadcast %110 : vector<1x128xf32> to vector<4x128xf32>
    %112 = arith.addf %107, %111 : vector<4x128xf32>
    %113 = arith.truncf %67 : vector<64x128xf32> to vector<64x128xbf16>
    %c1_48 = arith.constant 1 : index
    %c0_49 = arith.constant 0 : index
    %c0_50 = arith.constant 0 : index
    %114 = vector.load %arg6[%c1_48, %c0_49, %c0_50] : memref<12x128x128xbf16, #tpu.memory_space<vmem>>, vector<1x128x128xbf16>
    %115 = vector.shape_cast %114 : vector<1x128x128xbf16> to vector<128x128xbf16>
    %cst_51 = arith.constant dense<0.000000e+00> : vector<64x128xf32>
    %116 = tpu.matmul %113, %115, %cst_51 {dimension_numbers = #tpu.dot_dimension_numbers<[1], [0], [0], [1], [0, 0, 1, 1], [], []>} : vector<64x128xbf16>, vector<128x128xbf16>, vector<64x128xf32> -> vector<64x128xf32>
    %c5_52 = arith.constant 5 : index
    %c0_53 = arith.constant 0 : index
    %117 = vector.load %arg7[%c5_52, %c0_53] : memref<16x128xf32, #tpu.memory_space<vmem>>, vector<1x128xf32>
    %118 = vector.shape_cast %117 : vector<1x128xf32> to vector<128xf32>
    %119 = vector.shape_cast %118 : vector<128xf32> to vector<1x128xf32>
    %120 = vector.broadcast %119 : vector<1x128xf32> to vector<64x128xf32>
    %121 = arith.addf %116, %120 : vector<64x128xf32>
    %cst_54 = arith.constant 0.000000e+00 : f32
    %122 = vector.broadcast %cst_54 : f32 to vector<64x128xf32>
    %123 = arith.maximumf %121, %122 : vector<64x128xf32>
    %c2_55 = arith.constant 2 : index
    %c0_56 = arith.constant 0 : index
    %c0_57 = arith.constant 0 : index
    %124 = vector.load %arg6[%c2_55, %c0_56, %c0_57] : memref<12x128x128xbf16, #tpu.memory_space<vmem>>, vector<1x128x128xbf16>
    %125 = vector.shape_cast %124 : vector<1x128x128xbf16> to vector<128x128xbf16>
    %126 = arith.truncf %123 : vector<64x128xf32> to vector<64x128xbf16>
    %cst_58 = arith.constant dense<0.000000e+00> : vector<64x128xf32>
    %127 = tpu.matmul %126, %125, %cst_58 {dimension_numbers = #tpu.dot_dimension_numbers<[1], [0], [0], [1], [0, 0, 1, 1], [], []>} : vector<64x128xbf16>, vector<128x128xbf16>, vector<64x128xf32> -> vector<64x128xf32>
    %c6_59 = arith.constant 6 : index
    %c0_60 = arith.constant 0 : index
    %128 = vector.load %arg7[%c6_59, %c0_60] : memref<16x128xf32, #tpu.memory_space<vmem>>, vector<1x128xf32>
    %129 = vector.shape_cast %128 : vector<1x128xf32> to vector<128xf32>
    %130 = vector.shape_cast %129 : vector<128xf32> to vector<1x128xf32>
    %131 = vector.broadcast %130 : vector<1x128xf32> to vector<64x128xf32>
    %132 = arith.addf %127, %131 : vector<64x128xf32>
    %cst_61 = arith.constant 0.000000e+00 : f32
    %133 = vector.broadcast %cst_61 : f32 to vector<64x128xf32>
    %134 = arith.maximumf %132, %133 : vector<64x128xf32>
    %c3_62 = arith.constant 3 : index
    %c0_63 = arith.constant 0 : index
    %c0_64 = arith.constant 0 : index
    %135 = vector.load %arg6[%c3_62, %c0_63, %c0_64] : memref<12x128x128xbf16, #tpu.memory_space<vmem>>, vector<1x128x128xbf16>
    %136 = vector.shape_cast %135 : vector<1x128x128xbf16> to vector<128x128xbf16>
    %137 = arith.truncf %134 : vector<64x128xf32> to vector<64x128xbf16>
    %cst_65 = arith.constant dense<0.000000e+00> : vector<64x128xf32>
    %138 = tpu.matmul %137, %136, %cst_65 {dimension_numbers = #tpu.dot_dimension_numbers<[1], [0], [0], [1], [0, 0, 1, 1], [], []>} : vector<64x128xbf16>, vector<128x128xbf16>, vector<64x128xf32> -> vector<64x128xf32>
    %c7_66 = arith.constant 7 : index
    %c0_67 = arith.constant 0 : index
    %139 = vector.load %arg7[%c7_66, %c0_67] : memref<16x128xf32, #tpu.memory_space<vmem>>, vector<1x128xf32>
    %140 = vector.shape_cast %139 : vector<1x128xf32> to vector<128xf32>
    %141 = vector.shape_cast %140 : vector<128xf32> to vector<1x128xf32>
    %142 = vector.broadcast %141 : vector<1x128xf32> to vector<64x128xf32>
    %143 = arith.addf %138, %142 : vector<64x128xf32>
    %cst_68 = arith.constant 0.000000e+00 : f32
    %144 = vector.broadcast %cst_68 : f32 to vector<64x128xf32>
    %145 = arith.maximumf %143, %144 : vector<64x128xf32>
    %c4_69 = arith.constant 4 : index
    %c0_70 = arith.constant 0 : index
    %c0_71 = arith.constant 0 : index
    %146 = vector.load %arg6[%c4_69, %c0_70, %c0_71] : memref<12x128x128xbf16, #tpu.memory_space<vmem>>, vector<1x128x128xbf16>
    %147 = vector.shape_cast %146 : vector<1x128x128xbf16> to vector<128x128xbf16>
    %cst_72 = arith.constant dense<0.000000e+00> : vector<64x128xf32>
    %148 = tpu.matmul %113, %147, %cst_72 {dimension_numbers = #tpu.dot_dimension_numbers<[1], [0], [0], [1], [0, 0, 1, 1], [], []>} : vector<64x128xbf16>, vector<128x128xbf16>, vector<64x128xf32> -> vector<64x128xf32>
    %149 = arith.addf %145, %148 : vector<64x128xf32>
    %c8_73 = arith.constant 8 : index
    %c0_74 = arith.constant 0 : index
    %150 = vector.load %arg7[%c8_73, %c0_74] : memref<16x128xf32, #tpu.memory_space<vmem>>, vector<1x128xf32>
    %151 = vector.shape_cast %150 : vector<1x128xf32> to vector<128xf32>
    %152 = vector.shape_cast %151 : vector<128xf32> to vector<1x128xf32>
    %153 = vector.broadcast %152 : vector<1x128xf32> to vector<64x128xf32>
    %154 = arith.addf %149, %153 : vector<64x128xf32>
    %155 = arith.truncf %112 : vector<4x128xf32> to vector<4x128xbf16>
    %156 = arith.truncf %154 : vector<64x128xf32> to vector<64x128xbf16>
    %cst_75 = arith.constant dense<0.000000e+00> : vector<4x64xf32>
    %157 = tpu.matmul %155, %156, %cst_75 {dimension_numbers = #tpu.dot_dimension_numbers<[1], [1], [0], [0], [0, 0, 1, 0], [], []>} : vector<4x128xbf16>, vector<64x128xbf16>, vector<4x64xf32> -> vector<4x64xf32>
    %cst_76 = arith.constant 0.000000e+00 : f32
    %158 = vector.broadcast %cst_76 : f32 to vector<4x64xf32>
    %159 = arith.subf %158, %157 : vector<4x64xf32>
    %cst_77 = arith.constant 0.000000e+00 : f32
    %160 = vector.broadcast %cst_77 : f32 to vector<4x64xf32>
    %161 = arith.maximumf %159, %160 : vector<4x64xf32>
    %162 = math.absf %159 : vector<4x64xf32>
    %cst_78 = arith.constant 0.000000e+00 : f32
    %163 = vector.broadcast %cst_78 : f32 to vector<4x64xf32>
    %164 = arith.subf %163, %162 : vector<4x64xf32>
    %165 = math.exp %164 : vector<4x64xf32>
    %166 = math.log1p %165 : vector<4x64xf32>
    %167 = arith.addf %161, %166 : vector<4x64xf32>
    %cst_79 = arith.constant 0.693147182 : f32
    %168 = vector.broadcast %cst_79 : f32 to vector<4x64xf32>
    %169 = arith.subf %168, %167 : vector<4x64xf32>
    %170 = arith.mulf %3, %169 : vector<4x64xf32>
    %171 = vector.shape_cast %170 : vector<4x64xf32> to vector<1x4x64xf32>
    %cst_80 = arith.constant dense<0.000000e+00> : vector<1xf32>
    %172 = vector.multi_reduction <add>, %171, %cst_80 [1, 2] : vector<1x4x64xf32> to vector<1xf32>
    %173 = vector.shape_cast %172 : vector<1xf32> to vector<1x1x1xf32>
    %174 = vector.extract %173[0, 0, 0] : f32 from vector<1x1x1xf32>
    %175 = vector.broadcast %174 : f32 to vector<1x1xf32>
    %cst_81 = arith.constant 1.000000e+00 : f32
    %176 = vector.broadcast %cst_81 : f32 to vector<4x64xf32>
    %177 = arith.subf %176, %3 : vector<4x64xf32>
    %178 = arith.addf %167, %157 : vector<4x64xf32>
    %cst_82 = arith.constant 0.693147182 : f32
    %179 = vector.broadcast %cst_82 : f32 to vector<4x64xf32>
    %180 = arith.subf %178, %179 : vector<4x64xf32>
    %181 = arith.mulf %177, %180 : vector<4x64xf32>
    %182 = vector.shape_cast %181 : vector<4x64xf32> to vector<1x4x64xf32>
    %cst_83 = arith.constant dense<0.000000e+00> : vector<1xf32>
    %183 = vector.multi_reduction <add>, %182, %cst_83 [1, 2] : vector<1x4x64xf32> to vector<1xf32>
    %184 = vector.shape_cast %183 : vector<1xf32> to vector<1x1x1xf32>
    %185 = vector.extract %184[0, 0, 0] : f32 from vector<1x1x1xf32>
    %186 = vector.broadcast %185 : f32 to vector<1x1xf32>
    %cst_84 = arith.constant 1.920000e+02 : f32
    %187 = vector.broadcast %cst_84 : f32 to vector<1x1xf32>
    %188 = arith.divf %186, %187 : vector<1x1xf32>
    %cst_85 = arith.constant 6.400000e+01 : f32
    %189 = vector.broadcast %cst_85 : f32 to vector<1x1xf32>
    %190 = arith.divf %175, %189 : vector<1x1xf32>
    %191 = arith.subf %188, %190 : vector<1x1xf32>
    %c0_86 = arith.constant 0 : index
    %c0_87 = arith.constant 0 : index
    %192 = vector.load %arg4[%c0_86, %c0_87] : memref<4x128xf32, #tpu.memory_space<vmem>>, vector<4x128xf32>
    %193 = tpu.concatenate %192, %70 in 0 : vector<4x128xf32>, vector<4x128xf32> -> vector<8x128xf32>
    %c9_88 = arith.constant 9 : index
    %c0_89 = arith.constant 0 : index
    %c0_90 = arith.constant 0 : index
    %194 = vector.load %arg6[%c9_88, %c0_89, %c0_90] : memref<12x128x128xbf16, #tpu.memory_space<vmem>>, vector<1x128x128xbf16>
    %195 = vector.shape_cast %194 : vector<1x128x128xbf16> to vector<128x128xbf16>
    %196 = arith.truncf %193 : vector<8x128xf32> to vector<8x128xbf16>
    %cst_91 = arith.constant dense<0.000000e+00> : vector<8x128xf32>
    %197 = tpu.matmul %196, %195, %cst_91 {dimension_numbers = #tpu.dot_dimension_numbers<[1], [0], [0], [1], [0, 0, 1, 1], [], []>} : vector<8x128xbf16>, vector<128x128xbf16>, vector<8x128xf32> -> vector<8x128xf32>
    %c13 = arith.constant 13 : index
    %c0_92 = arith.constant 0 : index
    %198 = vector.load %arg7[%c13, %c0_92] : memref<16x128xf32, #tpu.memory_space<vmem>>, vector<1x128xf32>
    %199 = vector.shape_cast %198 : vector<1x128xf32> to vector<128xf32>
    %200 = vector.shape_cast %199 : vector<128xf32> to vector<1x128xf32>
    %201 = vector.broadcast %200 : vector<1x128xf32> to vector<8x128xf32>
    %202 = arith.addf %197, %201 : vector<8x128xf32>
    %cst_93 = arith.constant 0.000000e+00 : f32
    %203 = vector.broadcast %cst_93 : f32 to vector<8x128xf32>
    %204 = arith.maximumf %202, %203 : vector<8x128xf32>
    %c10_94 = arith.constant 10 : index
    %c0_95 = arith.constant 0 : index
    %c0_96 = arith.constant 0 : index
    %205 = vector.load %arg6[%c10_94, %c0_95, %c0_96] : memref<12x128x128xbf16, #tpu.memory_space<vmem>>, vector<1x128x128xbf16>
    %206 = vector.shape_cast %205 : vector<1x128x128xbf16> to vector<128x128xbf16>
    %207 = arith.truncf %204 : vector<8x128xf32> to vector<8x128xbf16>
    %cst_97 = arith.constant dense<0.000000e+00> : vector<8x128xf32>
    %208 = tpu.matmul %207, %206, %cst_97 {dimension_numbers = #tpu.dot_dimension_numbers<[1], [0], [0], [1], [0, 0, 1, 1], [], []>} : vector<8x128xbf16>, vector<128x128xbf16>, vector<8x128xf32> -> vector<8x128xf32>
    %c14 = arith.constant 14 : index
    %c0_98 = arith.constant 0 : index
    %209 = vector.load %arg7[%c14, %c0_98] : memref<16x128xf32, #tpu.memory_space<vmem>>, vector<1x128xf32>
    %210 = vector.shape_cast %209 : vector<1x128xf32> to vector<128xf32>
    %211 = vector.shape_cast %210 : vector<128xf32> to vector<1x128xf32>
    %212 = vector.broadcast %211 : vector<1x128xf32> to vector<8x128xf32>
    %213 = arith.addf %208, %212 : vector<8x128xf32>
    %cst_99 = arith.constant 0.000000e+00 : f32
    %214 = vector.broadcast %cst_99 : f32 to vector<8x128xf32>
    %215 = arith.maximumf %213, %214 : vector<8x128xf32>
    %c11_100 = arith.constant 11 : index
    %c0_101 = arith.constant 0 : index
    %c0_102 = arith.constant 0 : index
    %216 = vector.load %arg6[%c11_100, %c0_101, %c0_102] : memref<12x128x128xbf16, #tpu.memory_space<vmem>>, vector<1x128x128xbf16>
    %217 = vector.shape_cast %216 : vector<1x128x128xbf16> to vector<128x128xbf16>
    %218 = arith.truncf %215 : vector<8x128xf32> to vector<8x128xbf16>
    %cst_103 = arith.constant dense<0.000000e+00> : vector<8x128xf32>
    %219 = tpu.matmul %218, %217, %cst_103 {dimension_numbers = #tpu.dot_dimension_numbers<[1], [0], [0], [1], [0, 0, 1, 1], [], []>} : vector<8x128xbf16>, vector<128x128xbf16>, vector<8x128xf32> -> vector<8x128xf32>
    %c15 = arith.constant 15 : index
    %c0_104 = arith.constant 0 : index
    %220 = vector.load %arg7[%c15, %c0_104] : memref<16x128xf32, #tpu.memory_space<vmem>>, vector<1x128xf32>
    %221 = vector.shape_cast %220 : vector<1x128xf32> to vector<128xf32>
    %222 = vector.shape_cast %221 : vector<128xf32> to vector<1x128xf32>
    %223 = vector.broadcast %222 : vector<1x128xf32> to vector<8x128xf32>
    %224 = arith.addf %219, %223 : vector<8x128xf32>
    %225 = tpu.iota {dimensions = array<i32: 0>} : vector<8x128xi32>
    %226 = tpu.iota {dimensions = array<i32: 1>} : vector<8x128xi32>
    %c0_i32 = arith.constant 0 : i32
    %227 = vector.broadcast %c0_i32 : i32 to vector<8x128xi32>
    %228 = arith.cmpi eq, %226, %227 : vector<8x128xi32>
    %229 = arith.extui %228 : vector<8x128xi1> to vector<8x128xi32>
    %230 = arith.sitofp %229 : vector<8x128xi32> to vector<8x128xf32>
    %c4_i32 = arith.constant 4 : i32
    %231 = vector.broadcast %c4_i32 : i32 to vector<8x128xi32>
    %232 = arith.cmpi slt, %225, %231 : vector<8x128xi32>
    %cst_105 = arith.constant 0.000000e+00 : f32
    %233 = vector.broadcast %cst_105 : f32 to vector<8x128xf32>
    %234 = arith.subf %233, %224 : vector<8x128xf32>
    %235 = arith.select %232, %234, %224 : vector<8x128xi1>, vector<8x128xf32>
    %cst_106 = arith.constant 0.000000e+00 : f32
    %236 = vector.broadcast %cst_106 : f32 to vector<8x128xf32>
    %237 = arith.maximumf %235, %236 : vector<8x128xf32>
    %238 = math.absf %235 : vector<8x128xf32>
    %cst_107 = arith.constant 0.000000e+00 : f32
    %239 = vector.broadcast %cst_107 : f32 to vector<8x128xf32>
    %240 = arith.subf %239, %238 : vector<8x128xf32>
    %241 = math.exp %240 : vector<8x128xf32>
    %242 = math.log1p %241 : vector<8x128xf32>
    %243 = arith.addf %237, %242 : vector<8x128xf32>
    %244 = arith.mulf %230, %243 : vector<8x128xf32>
    %245 = vector.shape_cast %244 : vector<8x128xf32> to vector<1x8x128xf32>
    %cst_108 = arith.constant dense<0.000000e+00> : vector<1xf32>
    %246 = vector.multi_reduction <add>, %245, %cst_108 [1, 2] : vector<1x8x128xf32> to vector<1xf32>
    %247 = vector.shape_cast %246 : vector<1xf32> to vector<1x1x1xf32>
    %248 = vector.extract %247[0, 0, 0] : f32 from vector<1x1x1xf32>
    %249 = vector.broadcast %248 : f32 to vector<1x1xf32>
    %cst_109 = arith.constant 1.000000e-01 : f32
    %250 = vector.broadcast %cst_109 : f32 to vector<1x1xf32>
    %251 = arith.mulf %250, %249 : vector<1x1xf32>
    %cst_110 = arith.constant 4.000000e+00 : f32
    %252 = vector.broadcast %cst_110 : f32 to vector<1x1xf32>
    %253 = arith.divf %251, %252 : vector<1x1xf32>
    %254 = arith.addf %191, %253 : vector<1x1xf32>
    %c0_111 = arith.constant 0 : index
    %c0_112 = arith.constant 0 : index
    %255 = vector.load %arg8[%c0_111, %c0_112] : memref<1x1xf32, #tpu.memory_space<vmem>>, vector<1x1xf32>
    tpu.vector_store %arg8[%c0_111, %c0_112], %254 {strides = array<i32>} : memref<1x1xf32, #tpu.memory_space<vmem>>, vector<1x1xf32>,
    return
  }
}

</mosaic_0001>

<llo_original>
// kernel: gcn_infomax_forward.1
$region0: #{gcn_infomax_forward.1}
  #allocation0 [shape = 'u32[]', space=smem, size = 0x4, offset = 0x4, fixed_abs, tag = 'smem constant byte address 0x4 - core index']
  #allocation1 [shape = 'u32[144,128]{1,0:T(1,128)}', space=vmem, size = 0x12000, scoped, tag = 'internal scratch']
  #allocation2 [shape = 'f32[1]{0:T(128)S(6)}', space=smem, size = 0x200, scoped, tag = 'scoped memory for gcn_infomax_forward.1']
  %s0 = inlined_call_operand.<no memory space> [shape: f32[1], index: 0, kind: input, shape index: {}]
  %s1 = inlined_call_operand.vmem [shape: bf16[64,128], index: 1, kind: input, shape index: {}]
  %s2 = inlined_call_operand.vmem [shape: bf16[64,64], index: 2, kind: input, shape index: {}]
  %s3 = inlined_call_operand.vmem [shape: f32[4,64], index: 3, kind: input, shape index: {}]
  %s4 = inlined_call_operand.vmem [shape: f32[4,128], index: 4, kind: input, shape index: {}]
  %s5 = inlined_call_operand.vmem [shape: bf16[128,128], index: 5, kind: input, shape index: {}]
  %s6 = inlined_call_operand.vmem [shape: bf16[12,128,128], index: 6, kind: input, shape index: {}]
  %s7 = inlined_call_operand.vmem [shape: f32[16,128], index: 7, kind: input, shape index: {}]
  %s8 = inlined_call_operand.hbm [shape: f32[1,1], index: 8, kind: output, shape index: {}]
  %s9 = sld [smem:[#allocation0]]
  $region42: #{gcn_infomax_forward.1} parent=0
    _
  %s11 = ssub.s32 1, %s9
  %s12 = scalar_select 0, %s11, %s9
  %13 = sst [smem:[#allocation2]] %s0
  $region1: #{gcn_infomax_forward.1} parent=0
    #allocation3 [shape = 'u8[512]{0}', space=vmem, size = 0x400, scoped, tag = 'output window, operand 0, single buffered']
    #allocation4 [shape = 's32[1]{0}', space=sflag, size = 0x4, scoped, tag = 'scoped memory for gcn_infomax_forward.1']
    %14 = vsyncpa [#allocation4], 0
    // Predicated region
    $region2: #{gcn_infomax_forward.1} parent=1 // pred_check
      _
    $region3: #{gcn_infomax_forward.1} parent=1 // pred_check_branch
      %16 = sbr.rel (0) target = $region5
    $region4: #{gcn_infomax_forward.1} parent=1 // pred_region
      _
    $region5: #{gcn_infomax_forward.1} parent=1 // pred_fallthru
      _
    // Predicated region
    $region6: #{gcn_infomax_forward.1} parent=1 // pred_check
      _
    $region7: #{gcn_infomax_forward.1} parent=1 // pred_check_branch
      %18 = sbr.rel (0) target = $region9
    $region8: #{gcn_infomax_forward.1} parent=1 // pred_region
      _
    $region9: #{gcn_infomax_forward.1} parent=1 // pred_fallthru
      _
    // Predicated region
    $region10: #{gcn_infomax_forward.1} parent=1 // pred_check
      _
    $region11: #{gcn_infomax_forward.1} parent=1 // pred_check_branch
      %20 = sbr.rel (0) target = $region13
    $region12: #{gcn_infomax_forward.1} parent=1 // pred_region
      _
    $region13: #{gcn_infomax_forward.1} parent=1 // pred_fallthru
      _
    // Predicated region
    $region14: #{gcn_infomax_forward.1} parent=1 // pred_check
      _
    $region15: #{gcn_infomax_forward.1} parent=1 // pred_check_branch
      %22 = sbr.rel (0) target = $region17
    $region16: #{gcn_infomax_forward.1} parent=1 // pred_region
      _
    $region17: #{gcn_infomax_forward.1} parent=1 // pred_fallthru
      _
    // Predicated region
    $region18: #{gcn_infomax_forward.1} parent=1 // pred_check
      _
    $region19: #{gcn_infomax_forward.1} parent=1 // pred_check_branch
      %24 = sbr.rel (0) target = $region21
    $region20: #{gcn_infomax_forward.1} parent=1 // pred_region
      _
    $region21: #{gcn_infomax_forward.1} parent=1 // pred_fallthru
      _
    // Predicated region
    $region22: #{gcn_infomax_forward.1} parent=1 // pred_check
      _
    $region23: #{gcn_infomax_forward.1} parent=1 // pred_check_branch
      %26 = sbr.rel (0) target = $region25
    $region24: #{gcn_infomax_forward.1} parent=1 // pred_region
      _
    $region25: #{gcn_infomax_forward.1} parent=1 // pred_fallthru
      _
    // Predicated region
    $region26: #{gcn_infomax_forward.1} parent=1 // pred_check
      _
    $region27: #{gcn_infomax_forward.1} parent=1 // pred_check_branch
      %28 = sbr.rel (0) target = $region29
    $region28: #{gcn_infomax_forward.1} parent=1 // pred_region
      _
    $region29: #{gcn_infomax_forward.1} parent=1 // pred_fallthru
      _
    // Predicated region
    $region30: #{gcn_infomax_forward.1} parent=1 // pred_check
      _
    $region31: #{gcn_infomax_forward.1} parent=1 // pred_check_branch
      %30 = sbr.rel (0) target = $region33
    $region32: #{gcn_infomax_forward.1} parent=1 // pred_region
      _
    $region33: #{gcn_infomax_forward.1} parent=1 // pred_fallthru
      _
    %s32 = sld [smem:[#allocation2]]
    %v33 = vld [vmem:[%s1] sm:$0xf]
    %v34 = vld [vmem:[%s1 + $0x4] sm:$0xf]
    %v35 = vld [vmem:[%s1 + $0x8] sm:$0xf]
    %v36 = vld [vmem:[%s1 + $0xc] sm:$0xf]
    %v37 = vld [vmem:[%s1 + $0x10] sm:$0xf]
    %v38 = vld [vmem:[%s1 + $0x14] sm:$0xf]
    %v39 = vld [vmem:[%s1 + $0x18] sm:$0xf]
    %v40 = vld [vmem:[%s1 + $0x1c] sm:$0xf]
    %v41 = vld [vmem:[%s2] sm:$0xf]
    %v42 = vld [vmem:[%s2 + $0x4] sm:$0xf]
    %v43 = vld [vmem:[%s2 + $0x8] sm:$0xf]
    %v44 = vld [vmem:[%s2 + $0xc] sm:$0xf]
    %v45 = vld [vmem:[%s2 + $0x10] sm:$0xf]
    %v46 = vld [vmem:[%s2 + $0x14] sm:$0xf]
    %v47 = vld [vmem:[%s2 + $0x18] sm:$0xf]
    %v48 = vld [vmem:[%s2 + $0x1c] sm:$0xf]
    %v49 = vld [vmem:[%s3] sm:$0xf]
    %s50 = sadd.f32 %s32, 1.0
    %v51 = vunpack.c.l.bf16 %v33
    %v52 = vunpack.c.l.bf16 %v34
    %v53 = vunpack.c.l.bf16 %v35
    %v54 = vunpack.c.l.bf16 %v36
    %v55 = vunpack.c.l.bf16 %v37
    %v56 = vunpack.c.l.bf16 %v38
    %v57 = vunpack.c.l.bf16 %v39
    %v58 = vunpack.c.l.bf16 %v40
    %v59 = vstv %s50
    %v60 = vmul.f32 %v59, %v51
    %v61 = vmul.f32 %v59, %v52
    %v62 = vmul.f32 %v59, %v53
    %v63 = vmul.f32 %v59, %v54
    %v64 = vmul.f32 %v59, %v55
    %v65 = vmul.f32 %v59, %v56
    %v66 = vmul.f32 %v59, %v57
    %v67 = vmul.f32 %v59, %v58
    %v76 = vunpack.c.l.b16 %v41
    %v77 = vunpack.c.l.b16 %v42
    %v78 = vunpack.c.l.b16 %v43
    %v79 = vunpack.c.l.b16 %v44
    %v80 = vunpack.c.l.b16 %v45
    %v81 = vunpack.c.l.b16 %v46
    %v82 = vunpack.c.l.b16 %v47
    %v83 = vunpack.c.l.b16 %v48
    %v84 = vpack.c.b16 %v77, %v76
    %v85 = vpack.c.b16 %v79, %v78
    %v86 = vpack.c.b16 %v81, %v80
    %v87 = vpack.c.b16 %v83, %v82
    %v96 = vunpack.c.l.b16 %v33
    %v97 = vunpack.c.l.b16 %v34
    %v98 = vunpack.c.l.b16 %v35
    %v99 = vunpack.c.l.b16 %v36
    %v100 = vunpack.c.l.b16 %v37
    %v101 = vunpack.c.l.b16 %v38
    %v102 = vunpack.c.l.b16 %v39
    %v103 = vunpack.c.l.b16 %v40
    %v104 = vpack.c.b16 %v97, %v96
    %v105 = vpack.c.b16 %v99, %v98
    %v106 = vpack.c.b16 %v101, %v100
    %v107 = vpack.c.b16 %v103, %v102
    %vm112 = vcmask 523264
    %v114 = vsel %vm112, %v84, 0
    %v117 = vsel %vm112, %v85, 0
    %v120 = vsel %vm112, %v86, 0
    %v123 = vsel %vm112, %v87, 0
    %125 = vmatprep.subr.bf16.mxu0 0
    %126 = vmatpush1.bf16.msra.mxu0 %v104
    %127 = vmatprep.subr.bf16.mxu0 0
    %128 = vmatpush1.bf16.msra.mxu0 %v105
    %129 = vmatprep.subr.bf16.mxu0 0
    %130 = vmatpush1.bf16.msra.mxu0 %v106
    %131 = vmatprep.subr.bf16.mxu0 0
    %132 = vmatpush1.bf16.msra.mxu0 %v107
    %133 = vmatprep.subr.bf16.mxu0 0
    %134 = vmatpush1.bf16.msra.mxu0 0
    %135 = vmatprep.subr.bf16.mxu0 0
    %136 = vmatpush1.bf16.msra.mxu0 0
    %137 = vmatprep.subr.bf16.mxu0 0
    %138 = vmatpush1.bf16.msra.mxu0 0
    %139 = vmatprep.subr.bf16.mxu0 0
    %140 = vmatpush1.bf16.msra.mxu0 0
    %141 = vmatprep.subr.bf16.mxu0 0
    %142 = vmatpush1.bf16.msra.mxu0 0
    %143 = vmatprep.subr.bf16.mxu0 0
    %144 = vmatpush1.bf16.msra.mxu0 0
    %145 = vmatprep.subr.bf16.mxu0 0
    %146 = vmatpush1.bf16.msra.mxu0 0
    %147 = vmatprep.subr.bf16.mxu0 0
    %148 = vmatpush1.bf16.msra.mxu0 0
    %149 = vmatprep.subr.bf16.mxu0 0
    %150 = vmatpush1.bf16.msra.mxu0 0
    %151 = vmatprep.subr.bf16.mxu0 0
    %152 = vmatpush1.bf16.msra.mxu0 0
    %153 = vmatprep.subr.bf16.mxu0 0
    %154 = vmatpush1.bf16.msra.mxu0 0
    %155 = vmatprep.subr.bf16.mxu0 0
    %156 = vmatpush1.bf16.msra.mxu0 0
    %157 = vmatprep.mubr.bf16.mxu0 0
    %158 = vmatmul.mubr.bf16.gmra.mrb[0].mxu0 %v114
    %v159 = vpop.f32.mrb[0].mxu0
    %v160 = vadd.f32 0.0, %v159
    %v161 = vpop.f32.mrb[0].mxu0
    %v162 = vpop.f32.mrb[0].mxu0
    %v163 = vadd.f32 0.0, %v162
    %v164 = vpop.f32.mrb[0].mxu0
    %165 = vmatprep.mubr.bf16.mxu0 0
    %166 = vmatmul.mubr.bf16.gmra.mrb[0].mxu0 %v117
    %v167 = vpop.f32.mrb[0].mxu0
    %v168 = vadd.f32 0.0, %v167
    %v169 = vpop.f32.mrb[0].mxu0
    %v170 = vpop.f32.mrb[0].mxu0
    %v171 = vadd.f32 0.0, %v170
    %v172 = vpop.f32.mrb[0].mxu0
    %173 = vmatprep.mubr.bf16.mxu0 0
    %174 = vmatmul.mubr.bf16.gmra.mrb[0].mxu0 %v120
    %v175 = vpop.f32.mrb[0].mxu0
    %v176 = vadd.f32 0.0, %v175
    %v177 = vpop.f32.mrb[0].mxu0
    %v178 = vpop.f32.mrb[0].mxu0
    %v179 = vadd.f32 0.0, %v178
    %v180 = vpop.f32.mrb[0].mxu0
    %181 = vmatprep.mubr.bf16.mxu0 0
    %182 = vmatmul.mubr.bf16.gmra.mrb[0].mxu0 %v123
    %v183 = vpop.f32.mrb[0].mxu0
    %v184 = vadd.f32 0.0, %v183
    %v185 = vpop.f32.mrb[0].mxu0
    %v186 = vpop.f32.mrb[0].mxu0
    %v187 = vadd.f32 0.0, %v186
    %v188 = vpop.f32.mrb[0].mxu0
    %189 = vdwg.mxu0
    %v190 = vadd.f32 %v60, %v160
    %v191 = vadd.f32 %v61, %v163
    %v192 = vadd.f32 %v62, %v168
    %v193 = vadd.f32 %v63, %v171
    %v194 = vadd.f32 %v64, %v176
    %v195 = vadd.f32 %v65, %v179
    %v196 = vadd.f32 %v66, %v184
    %v197 = vadd.f32 %v67, %v187
    %v198 = vld [vmem:[%s5] sm:$0xf]
    %v199 = vld [vmem:[%s5 + $0x4] sm:$0xf]
    %v200 = vld [vmem:[%s5 + $0x8] sm:$0xf]
    %v201 = vld [vmem:[%s5 + $0xc] sm:$0xf]
    %v202 = vld [vmem:[%s5 + $0x10] sm:$0xf]
    %v203 = vld [vmem:[%s5 + $0x14] sm:$0xf]
    %v204 = vld [vmem:[%s5 + $0x18] sm:$0xf]
    %v205 = vld [vmem:[%s5 + $0x1c] sm:$0xf]
    %v206 = vld [vmem:[%s5 + $0x20] sm:$0xf]
    %v207 = vld [vmem:[%s5 + $0x24] sm:$0xf]
    %v208 = vld [vmem:[%s5 + $0x28] sm:$0xf]
    %v209 = vld [vmem:[%s5 + $0x2c] sm:$0xf]
    %v210 = vld [vmem:[%s5 + $0x30] sm:$0xf]
    %v211 = vld [vmem:[%s5 + $0x34] sm:$0xf]
    %v212 = vld [vmem:[%s5 + $0x38] sm:$0xf]
    %v213 = vld [vmem:[%s5 + $0x3c] sm:$0xf]
    %v214 = vpack.c.bf16 %v191, %v190
    %v215 = vpack.c.bf16 %v193, %v192
    %v216 = vpack.c.bf16 %v195, %v194
    %v217 = vpack.c.bf16 %v197, %v196
    %v218 = vld [vmem:[%s7] sm:$0x1]
    %v219 = vlaneseq
    %v220 = vshrl.u32 %v219, 7
    %v221 = vsub.s32 0, %v220
    %v222 = vrot.slane %v218, %v221
    %v239 = vunpack.c.l.b16 %v198
    %v240 = vunpack.c.l.b16 %v199
    %v241 = vunpack.c.l.b16 %v200
    %v242 = vunpack.c.l.b16 %v201
    %v243 = vunpack.c.l.b16 %v202
    %v244 = vunpack.c.l.b16 %v203
    %v245 = vunpack.c.l.b16 %v204
    %v246 = vunpack.c.l.b16 %v205
    %v247 = vunpack.c.l.b16 %v206
    %v248 = vunpack.c.l.b16 %v207
    %v249 = vunpack.c.l.b16 %v208
    %v250 = vunpack.c.l.b16 %v209
    %v251 = vunpack.c.l.b16 %v210
    %v252 = vunpack.c.l.b16 %v211
    %v253 = vunpack.c.l.b16 %v212
    %v254 = vunpack.c.l.b16 %v213
    %v255 = vpack.c.b16 %v240, %v239
    %v256 = vpack.c.b16 %v242, %v241
    %v257 = vpack.c.b16 %v244, %v243
    %v258 = vpack.c.b16 %v246, %v245
    %v259 = vpack.c.b16 %v248, %v247
    %v260 = vpack.c.b16 %v250, %v249
    %v261 = vpack.c.b16 %v252, %v251
    %v262 = vpack.c.b16 %v254, %v253
    %271 = vmatprep.subr.bf16.mxu0 0
    %272 = vmatpush1.bf16.msra.mxu0 %v255
    %273 = vmatprep.subr.bf16.mxu0 0
    %274 = vmatpush1.bf16.msra.mxu0 %v256
    %275 = vmatprep.subr.bf16.mxu0 0
    %276 = vmatpush1.bf16.msra.mxu0 %v257
    %277 = vmatprep.subr.bf16.mxu0 0
    %278 = vmatpush1.bf16.msra.mxu0 %v258
    %279 = vmatprep.subr.bf16.mxu0 0
    %280 = vmatpush1.bf16.msra.mxu0 %v259
    %281 = vmatprep.subr.bf16.mxu0 0
    %282 = vmatpush1.bf16.msra.mxu0 %v260
    %283 = vmatprep.subr.bf16.mxu0 0
    %284 = vmatpush1.bf16.msra.mxu0 %v261
    %285 = vmatprep.subr.bf16.mxu0 0
    %286 = vmatpush1.bf16.msra.mxu0 %v262
    %287 = vmatprep.subr.bf16.mxu0 0
    %288 = vmatpush1.bf16.msra.mxu0 0
    %289 = vmatprep.subr.bf16.mxu0 0
    %290 = vmatpush1.bf16.msra.mxu0 0
    %291 = vmatprep.subr.bf16.mxu0 0
    %292 = vmatpush1.bf16.msra.mxu0 0
    %293 = vmatprep.subr.bf16.mxu0 0
    %294 = vmatpush1.bf16.msra.mxu0 0
    %295 = vmatprep.subr.bf16.mxu0 0
    %296 = vmatpush1.bf16.msra.mxu0 0
    %297 = vmatprep.subr.bf16.mxu0 0
    %298 = vmatpush1.bf16.msra.mxu0 0
    %299 = vmatprep.subr.bf16.mxu0 0
    %300 = vmatpush1.bf16.msra.mxu0 0
    %301 = vmatprep.subr.bf16.mxu0 0
    %302 = vmatpush1.bf16.msra.mxu0 0
    %303 = vmatprep.mubr.bf16.mxu0 0
    %304 = vmatmul.mubr.bf16.gmra.mrb[0].mxu0 %v214
    %v305 = vpop.f32.mrb[0].mxu0
    %v306 = vadd.f32 %v222, %v305
    %v307 = vpop.f32.mrb[0].mxu0
    %v308 = vpop.f32.mrb[0].mxu0
    %v309 = vadd.f32 %v222, %v308
    %v310 = vpop.f32.mrb[0].mxu0
    %311 = vmatprep.mubr.bf16.mxu0 0
    %312 = vmatmul.mubr.bf16.gmra.mrb[0].mxu0 %v215
    %v313 = vpop.f32.mrb[0].mxu0
    %v314 = vadd.f32 %v222, %v313
    %v315 = vpop.f32.mrb[0].mxu0
    %v316 = vpop.f32.mrb[0].mxu0
    %v317 = vadd.f32 %v222, %v316
    %v318 = vpop.f32.mrb[0].mxu0
    %319 = vmatprep.mubr.bf16.mxu0 0
    %320 = vmatmul.mubr.bf16.gmra.mrb[0].mxu0 %v216
    %v321 = vpop.f32.mrb[0].mxu0
    %v322 = vadd.f32 %v222, %v321
    %v323 = vpop.f32.mrb[0].mxu0
    %v324 = vpop.f32.mrb[0].mxu0
    %v325 = vadd.f32 %v222, %v324
    %v326 = vpop.f32.mrb[0].mxu0
    %327 = vmatprep.mubr.bf16.mxu0 0
    %328 = vmatmul.mubr.bf16.gmra.mrb[0].mxu0 %v217
    %v329 = vpop.f32.mrb[0].mxu0
    %v330 = vadd.f32 %v222, %v329
    %v331 = vpop.f32.mrb[0].mxu0
    %v332 = vpop.f32.mrb[0].mxu0
    %v333 = vadd.f32 %v222, %v332
    %v334 = vpop.f32.mrb[0].mxu0
    %335 = vdwg.mxu0
    %v336 = vmax.f32 %v306, 0.0
    %v337 = vmax.f32 %v309, 0.0
    %v338 = vmax.f32 %v314, 0.0
    %v339 = vmax.f32 %v317, 0.0
    %v340 = vmax.f32 %v322, 0.0
    %v341 = vmax.f32 %v325, 0.0
    %v342 = vmax.f32 %v330, 0.0
    %v343 = vmax.f32 %v333, 0.0
    %v344 = vld [vmem:[%s6] sm:$0xf]
    %v345 = vld [vmem:[%s6 + $0x4] sm:$0xf]
    %v346 = vld [vmem:[%s6 + $0x8] sm:$0xf]
    %v347 = vld [vmem:[%s6 + $0xc] sm:$0xf]
    %v348 = vld [vmem:[%s6 + $0x10] sm:$0xf]
    %v349 = vld [vmem:[%s6 + $0x14] sm:$0xf]
    %v350 = vld [vmem:[%s6 + $0x18] sm:$0xf]
    %v351 = vld [vmem:[%s6 + $0x1c] sm:$0xf]
    %v352 = vld [vmem:[%s6 + $0x20] sm:$0xf]
    %v353 = vld [vmem:[%s6 + $0x24] sm:$0xf]
    %v354 = vld [vmem:[%s6 + $0x28] sm:$0xf]
    %v355 = vld [vmem:[%s6 + $0x2c] sm:$0xf]
    %v356 = vld [vmem:[%s6 + $0x30] sm:$0xf]
    %v357 = vld [vmem:[%s6 + $0x34] sm:$0xf]
    %v358 = vld [vmem:[%s6 + $0x38] sm:$0xf]
    %v359 = vld [vmem:[%s6 + $0x3c] sm:$0xf]
    %v360 = vpack.c.bf16 %v337, %v336
    %v361 = vpack.c.bf16 %v339, %v338
    %v362 = vpack.c.bf16 %v341, %v340
    %v363 = vpack.c.bf16 %v343, %v342
    %v364 = vld [vmem:[%s7 + $0x1] sm:$0x1]
    %v365 = vlaneseq
    %v366 = vshrl.u32 %v365, 7
    %v367 = vsub.s32 0, %v366
    %v368 = vrot.slane %v364, %v367
    %v385 = vunpack.c.l.b16 %v344
    %v386 = vunpack.c.l.b16 %v345
    %v387 = vunpack.c.l.b16 %v346
    %v388 = vunpack.c.l.b16 %v347
    %v389 = vunpack.c.l.b16 %v348
    %v390 = vunpack.c.l.b16 %v349
    %v391 = vunpack.c.l.b16 %v350
    %v392 = vunpack.c.l.b16 %v351
    %v393 = vunpack.c.l.b16 %v352
    %v394 = vunpack.c.l.b16 %v353
    %v395 = vunpack.c.l.b16 %v354
    %v396 = vunpack.c.l.b16 %v355
    %v397 = vunpack.c.l.b16 %v356
    %v398 = vunpack.c.l.b16 %v357
    %v399 = vunpack.c.l.b16 %v358
    %v400 = vunpack.c.l.b16 %v359
    %v401 = vpack.c.b16 %v386, %v385
    %v402 = vpack.c.b16 %v388, %v387
    %v403 = vpack.c.b16 %v390, %v389
    %v404 = vpack.c.b16 %v392, %v391
    %v405 = vpack.c.b16 %v394, %v393
    %v406 = vpack.c.b16 %v396, %v395
    %v407 = vpack.c.b16 %v398, %v397
    %v408 = vpack.c.b16 %v400, %v399
    %417 = vmatprep.subr.bf16.mxu0 0
    %418 = vmatpush1.bf16.msra.mxu0 %v401
    %419 = vmatprep.subr.bf16.mxu0 0
    %420 = vmatpush1.bf16.msra.mxu0 %v402
    %421 = vmatprep.subr.bf16.mxu0 0
    %422 = vmatpush1.bf16.msra.mxu0 %v403
    %423 = vmatprep.subr.bf16.mxu0 0
    %424 = vmatpush1.bf16.msra.mxu0 %v404
    %425 = vmatprep.subr.bf16.mxu0 0
    %426 = vmatpush1.bf16.msra.mxu0 %v405
    %427 = vmatprep.subr.bf16.mxu0 0
    %428 = vmatpush1.bf16.msra.mxu0 %v406
    %429 = vmatprep.subr.bf16.mxu0 0
    %430 = vmatpush1.bf16.msra.mxu0 %v407
    %431 = vmatprep.subr.bf16.mxu0 0
    %432 = vmatpush1.bf16.msra.mxu0 %v408
    %433 = vmatprep.subr.bf16.mxu0 0
    %434 = vmatpush1.bf16.msra.mxu0 0
    %435 = vmatprep.subr.bf16.mxu0 0
    %436 = vmatpush1.bf16.msra.mxu0 0
    %437 = vmatprep.subr.bf16.mxu0 0
    %438 = vmatpush1.bf16.msra.mxu0 0
    %439 = vmatprep.subr.bf16.mxu0 0
    %440 = vmatpush1.bf16.msra.mxu0 0
    %441 = vmatprep.subr.bf16.mxu0 0
    %442 = vmatpush1.bf16.msra.mxu0 0
    %443 = vmatprep.subr.bf16.mxu0 0
    %444 = vmatpush1.bf16.msra.mxu0 0
    %445 = vmatprep.subr.bf16.mxu0 0
    %446 = vmatpush1.bf16.msra.mxu0 0
    %447 = vmatprep.subr.bf16.mxu0 0
    %448 = vmatpush1.bf16.msra.mxu0 0
    %449 = vmatprep.mubr.bf16.mxu0 0
    %450 = vmatmul.mubr.bf16.gmra.mrb[0].mxu0 %v360
    %v451 = vpop.f32.mrb[0].mxu0
    %v452 = vadd.f32 %v368, %v451
    %v453 = vpop.f32.mrb[0].mxu0
    %v454 = vpop.f32.mrb[0].mxu0
    %v455 = vadd.f32 %v368, %v454
    %v456 = vpop.f32.mrb[0].mxu0
    %457 = vmatprep.mubr.bf16.mxu0 0
    %458 = vmatmul.mubr.bf16.gmra.mrb[0].mxu0 %v361
    %v459 = vpop.f32.mrb[0].mxu0
    %v460 = vadd.f32 %v368, %v459
    %v461 = vpop.f32.mrb[0].mxu0
    %v462 = vpop.f32.mrb[0].mxu0
    %v463 = vadd.f32 %v368, %v462
    %v464 = vpop.f32.mrb[0].mxu0
    %465 = vmatprep.mubr.bf16.mxu0 0
    %466 = vmatmul.mubr.bf16.gmra.mrb[0].mxu0 %v362
    %v467 = vpop.f32.mrb[0].mxu0
    %v468 = vadd.f32 %v368, %v467
    %v469 = vpop.f32.mrb[0].mxu0
    %v470 = vpop.f32.mrb[0].mxu0
    %v471 = vadd.f32 %v368, %v470
    %v472 = vpop.f32.mrb[0].mxu0
    %473 = vmatprep.mubr.bf16.mxu0 0
    %474 = vmatmul.mubr.bf16.gmra.mrb[0].mxu0 %v363
    %v475 = vpop.f32.mrb[0].mxu0
    %v476 = vadd.f32 %v368, %v475
    %v477 = vpop.f32.mrb[0].mxu0
    %v478 = vpop.f32.mrb[0].mxu0
    %v479 = vadd.f32 %v368, %v478
    %v480 = vpop.f32.mrb[0].mxu0
    %481 = vdwg.mxu0
    %v482 = vmax.f32 %v452, 0.0
    %v483 = vmax.f32 %v455, 0.0
    %v484 = vmax.f32 %v460, 0.0
    %v485 = vmax.f32 %v463, 0.0
    %v486 = vmax.f32 %v468, 0.0
    %v487 = vmax.f32 %v471, 0.0
    %v488 = vmax.f32 %v476, 0.0
    %v489 = vmax.f32 %v479, 0.0
    %v490 = vld [vmem:[%s7 + $0x2] sm:$0x1]
    %v491 = vlaneseq
    %v492 = vshrl.u32 %v491, 7
    %v493 = vsub.s32 0, %v492
    %v494 = vrot.slane %v490, %v493
    %v495 = vadd.f32 %v482, %v494
    %v496 = vadd.f32 %v483, %v494
    %v497 = vadd.f32 %v484, %v494
    %v498 = vadd.f32 %v485, %v494
    %v499 = vadd.f32 %v486, %v494
    %v500 = vadd.f32 %v487, %v494
    %v501 = vadd.f32 %v488, %v494
    %v502 = vadd.f32 %v489, %v494
    %v503 = vmax.f32 %v495, 0.0
    %v504 = vmax.f32 %v496, 0.0
    %v505 = vmax.f32 %v497, 0.0
    %v506 = vmax.f32 %v498, 0.0
    %v507 = vmax.f32 %v499, 0.0
    %v508 = vmax.f32 %v500, 0.0
    %v509 = vmax.f32 %v501, 0.0
    %v510 = vmax.f32 %v502, 0.0
    %v511 = vadd.f32 %v503, %v504
    %v512 = vadd.f32 %v511, %v505
    %v513 = vadd.f32 %v512, %v506
    %v514 = vadd.f32 %v513, %v507
    %v515 = vadd.f32 %v514, %v508
    %v516 = vadd.f32 %v515, %v509
    %v517 = vadd.f32 %v516, %v510
    %v518 = vrot.slane %v517, 4
    %v519 = vadd.f32 %v517, %v518
    %v520 = vrot.slane %v519, 2
    %v521 = vadd.f32 %v519, %v520
    %v522 = vrot.slane %v521, 1
    %v523 = vadd.f32 %v521, %v522
    %v524 = vrcp.pop 64.0
    %v525 = vmul.f32 %v523, %v524
    %v526 = vsub.f32 %v503, %v525
    %v527 = vsub.f32 %v504, %v525
    %v528 = vsub.f32 %v505, %v525
    %v529 = vsub.f32 %v506, %v525
    %v530 = vsub.f32 %v507, %v525
    %v531 = vsub.f32 %v508, %v525
    %v532 = vsub.f32 %v509, %v525
    %v533 = vsub.f32 %v510, %v525
    %v534 = vmul.f32 %v526, %v526
    %v535 = vmul.f32 %v527, %v527
    %v536 = vmul.f32 %v528, %v528
    %v537 = vmul.f32 %v529, %v529
    %v538 = vmul.f32 %v530, %v530
    %v539 = vmul.f32 %v531, %v531
    %v540 = vmul.f32 %v532, %v532
    %v541 = vmul.f32 %v533, %v533
    %v542 = vadd.f32 %v534, %v535
    %v543 = vadd.f32 %v542, %v536
    %v544 = vadd.f32 %v543, %v537
    %v545 = vadd.f32 %v544, %v538
    %v546 = vadd.f32 %v545, %v539
    %v547 = vadd.f32 %v546, %v540
    %v548 = vadd.f32 %v547, %v541
    %v549 = vrot.slane %v548, 4
    %v550 = vadd.f32 %v548, %v549
    %v551 = vrot.slane %v550, 2
    %v552 = vadd.f32 %v550, %v551
    %v553 = vrot.slane %v552, 1
    %v554 = vadd.f32 %v552, %v553
    %v555 = vmul.f32 %v554, %v524
    %v556 = vadd.f32 %v555, 1e-05
    %v557 = vrsqrt.pop %v556
    %v558 = vmul.f32 %v526, %v557
    %v559 = vmul.f32 %v527, %v557
    %v560 = vmul.f32 %v528, %v557
    %v561 = vmul.f32 %v529, %v557
    %v562 = vmul.f32 %v530, %v557
    %v563 = vmul.f32 %v531, %v557
    %v564 = vmul.f32 %v532, %v557
    %v565 = vmul.f32 %v533, %v557
    %v566 = vld [vmem:[%s7 + $0x3] sm:$0x1]
    %v567 = vlaneseq
    %v568 = vshrl.u32 %v567, 7
    %v569 = vsub.s32 0, %v568
    %v570 = vrot.slane %v566, %v569
    %v571 = vmul.f32 %v558, %v570
    %v572 = vmul.f32 %v559, %v570
    %v573 = vmul.f32 %v560, %v570
    %v574 = vmul.f32 %v561, %v570
    %v575 = vmul.f32 %v562, %v570
    %v576 = vmul.f32 %v563, %v570
    %v577 = vmul.f32 %v564, %v570
    %v578 = vmul.f32 %v565, %v570
    %v579 = vld [vmem:[%s7 + $0x4] sm:$0x1]
    %v580 = vlaneseq
    %v581 = vshrl.u32 %v580, 7
    %v582 = vsub.s32 0, %v581
    %v583 = vrot.slane %v579, %v582
    %v584 = vadd.f32 %v571, %v583
    %v585 = vadd.f32 %v572, %v583
    %v586 = vadd.f32 %v573, %v583
    %v587 = vadd.f32 %v574, %v583
    %v588 = vadd.f32 %v575, %v583
    %v589 = vadd.f32 %v576, %v583
    %v590 = vadd.f32 %v577, %v583
    %v591 = vadd.f32 %v578, %v583
    %v592 = vpack.c.bf16 %v585, %v584
    %v593 = vpack.c.bf16 %v587, %v586
    %v594 = vpack.c.bf16 %v589, %v588
    %v595 = vpack.c.bf16 %v591, %v590
    %v596 = vpack.c.bf16 %v49, %v49
    %v598 = vsel %vm112, %v596, 0
    %600 = vmatprep.subr.bf16.mxu0 0
    %601 = vmatpush1.bf16.msra.mxu0 %v592
    %602 = vmatprep.subr.bf16.mxu0 0
    %603 = vmatpush1.bf16.msra.mxu0 %v593
    %604 = vmatprep.subr.bf16.mxu0 0
    %605 = vmatpush1.bf16.msra.mxu0 %v594
    %606 = vmatprep.subr.bf16.mxu0 0
    %607 = vmatpush1.bf16.msra.mxu0 %v595
    %608 = vmatprep.subr.bf16.mxu0 0
    %609 = vmatpush1.bf16.msra.mxu0 0
    %610 = vmatprep.subr.bf16.mxu0 0
    %611 = vmatpush1.bf16.msra.mxu0 0
    %612 = vmatprep.subr.bf16.mxu0 0
    %613 = vmatpush1.bf16.msra.mxu0 0
    %614 = vmatprep.subr.bf16.mxu0 0
    %615 = vmatpush1.bf16.msra.mxu0 0
    %616 = vmatprep.subr.bf16.mxu0 0
    %617 = vmatpush1.bf16.msra.mxu0 0
    %618 = vmatprep.subr.bf16.mxu0 0
    %619 = vmatpush1.bf16.msra.mxu0 0
    %620 = vmatprep.subr.bf16.mxu0 0
    %621 = vmatpush1.bf16.msra.mxu0 0
    %622 = vmatprep.subr.bf16.mxu0 0
    %623 = vmatpush1.bf16.msra.mxu0 0
    %624 = vmatprep.subr.bf16.mxu0 0
    %625 = vmatpush1.bf16.msra.mxu0 0
    %626 = vmatprep.subr.bf16.mxu0 0
    %627 = vmatpush1.bf16.msra.mxu0 0
    %628 = vmatprep.subr.bf16.mxu0 0
    %629 = vmatpush1.bf16.msra.mxu0 0
    %630 = vmatprep.subr.bf16.mxu0 0
    %631 = vmatpush1.bf16.msra.mxu0 0
    %632 = vmatprep.mubr.bf16.mxu0 0
    %633 = vmatmul.mubr.bf16.gmra.mrb[0].mxu0 %v598
    %v634 = vpop.f32.mrb[0].mxu0
    %v635 = vadd.f32 0.0, %v634
    %v636 = vpop.f32.mrb[0].mxu0
    %v637 = vpop.f32.mrb[0].mxu0
    %v638 = vpop.f32.mrb[0].mxu0
    %639 = vdwg.mxu0
    %v640 = vpack.c.bf16 %v635, %v635
    %s641 = scalar_lea.vmem %s6, 320
    %v642 = vld [vmem:[%s641] sm:$0xf]
    %v643 = vld [vmem:[%s641 + $0x4] sm:$0xf]
    %v644 = vld [vmem:[%s641 + $0x8] sm:$0xf]
    %v645 = vld [vmem:[%s641 + $0xc] sm:$0xf]
    %v646 = vld [vmem:[%s641 + $0x10] sm:$0xf]
    %v647 = vld [vmem:[%s641 + $0x14] sm:$0xf]
    %v648 = vld [vmem:[%s641 + $0x18] sm:$0xf]
    %v649 = vld [vmem:[%s641 + $0x1c] sm:$0xf]
    %v650 = vld [vmem:[%s641 + $0x20] sm:$0xf]
    %v651 = vld [vmem:[%s641 + $0x24] sm:$0xf]
    %v652 = vld [vmem:[%s641 + $0x28] sm:$0xf]
    %v653 = vld [vmem:[%s641 + $0x2c] sm:$0xf]
    %v654 = vld [vmem:[%s641 + $0x30] sm:$0xf]
    %v655 = vld [vmem:[%s641 + $0x34] sm:$0xf]
    %v656 = vld [vmem:[%s641 + $0x38] sm:$0xf]
    %v657 = vld [vmem:[%s641 + $0x3c] sm:$0xf]
    %v658 = vld [vmem:[%s7 + $0x9] sm:$0x1]
    %v659 = vlaneseq
    %v660 = vshrl.u32 %v659, 7
    %v661 = vsub.s32 0, %v660
    %v662 = vrot.slane %v658, %v661
    %v679 = vunpack.c.l.b16 %v642
    %v680 = vunpack.c.l.b16 %v643
    %v681 = vunpack.c.l.b16 %v644
    %v682 = vunpack.c.l.b16 %v645
    %v683 = vunpack.c.l.b16 %v646
    %v684 = vunpack.c.l.b16 %v647
    %v685 = vunpack.c.l.b16 %v648
    %v686 = vunpack.c.l.b16 %v649
    %v687 = vunpack.c.l.b16 %v650
    %v688 = vunpack.c.l.b16 %v651
    %v689 = vunpack.c.l.b16 %v652
    %v690 = vunpack.c.l.b16 %v653
    %v691 = vunpack.c.l.b16 %v654
    %v692 = vunpack.c.l.b16 %v655
    %v693 = vunpack.c.l.b16 %v656
    %v694 = vunpack.c.l.b16 %v657
    %v695 = vpack.c.b16 %v680, %v679
    %v696 = vpack.c.b16 %v682, %v681
    %v697 = vpack.c.b16 %v684, %v683
    %v698 = vpack.c.b16 %v686, %v685
    %v699 = vpack.c.b16 %v688, %v687
    %v700 = vpack.c.b16 %v690, %v689
    %v701 = vpack.c.b16 %v692, %v691
    %v702 = vpack.c.b16 %v694, %v693
    %711 = vmatprep.subr.bf16.mxu0 0
    %712 = vmatpush1.bf16.msra.mxu0 %v695
    %713 = vmatprep.subr.bf16.mxu0 0
    %714 = vmatpush1.bf16.msra.mxu0 %v696
    %715 = vmatprep.subr.bf16.mxu0 0
    %716 = vmatpush1.bf16.msra.mxu0 %v697
    %717 = vmatprep.subr.bf16.mxu0 0
    %718 = vmatpush1.bf16.msra.mxu0 %v698
    %719 = vmatprep.subr.bf16.mxu0 0
    %720 = vmatpush1.bf16.msra.mxu0 %v699
    %721 = vmatprep.subr.bf16.mxu0 0
    %722 = vmatpush1.bf16.msra.mxu0 %v700
    %723 = vmatprep.subr.bf16.mxu0 0
    %724 = vmatpush1.bf16.msra.mxu0 %v701
    %725 = vmatprep.subr.bf16.mxu0 0
    %726 = vmatpush1.bf16.msra.mxu0 %v702
    %727 = vmatprep.subr.bf16.mxu0 0
    %728 = vmatpush1.bf16.msra.mxu0 0
    %729 = vmatprep.subr.bf16.mxu0 0
    %730 = vmatpush1.bf16.msra.mxu0 0
    %731 = vmatprep.subr.bf16.mxu0 0
    %732 = vmatpush1.bf16.msra.mxu0 0
    %733 = vmatprep.subr.bf16.mxu0 0
    %734 = vmatpush1.bf16.msra.mxu0 0
    %735 = vmatprep.subr.bf16.mxu0 0
    %736 = vmatpush1.bf16.msra.mxu0 0
    %737 = vmatprep.subr.bf16.mxu0 0
    %738 = vmatpush1.bf16.msra.mxu0 0
    %739 = vmatprep.subr.bf16.mxu0 0
    %740 = vmatpush1.bf16.msra.mxu0 0
    %741 = vmatprep.subr.bf16.mxu0 0
    %742 = vmatpush1.bf16.msra.mxu0 0
    %743 = vmatprep.mubr.bf16.mxu0 0
    %744 = vmatmul.mubr.bf16.gmra.mrb[0].mxu0 %v640
    %v745 = vpop.f32.mrb[0].mxu0
    %v746 = vadd.f32 %v662, %v745
    %v747 = vpop.f32.mrb[0].mxu0
    %v748 = vpop.f32.mrb[0].mxu0
    %v749 = vpop.f32.mrb[0].mxu0
    %750 = vdwg.mxu0
    %v751 = vmax.f32 %v746, 0.0
    %s752 = scalar_lea.vmem %s6, 384
    %v753 = vld [vmem:[%s752] sm:$0xf]
    %v754 = vld [vmem:[%s752 + $0x4] sm:$0xf]
    %v755 = vld [vmem:[%s752 + $0x8] sm:$0xf]
    %v756 = vld [vmem:[%s752 + $0xc] sm:$0xf]
    %v757 = vld [vmem:[%s752 + $0x10] sm:$0xf]
    %v758 = vld [vmem:[%s752 + $0x14] sm:$0xf]
    %v759 = vld [vmem:[%s752 + $0x18] sm:$0xf]
    %v760 = vld [vmem:[%s752 + $0x1c] sm:$0xf]
    %v761 = vld [vmem:[%s752 + $0x20] sm:$0xf]
    %v762 = vld [vmem:[%s752 + $0x24] sm:$0xf]
    %v763 = vld [vmem:[%s752 + $0x28] sm:$0xf]
    %v764 = vld [vmem:[%s752 + $0x2c] sm:$0xf]
    %v765 = vld [vmem:[%s752 + $0x30] sm:$0xf]
    %v766 = vld [vmem:[%s752 + $0x34] sm:$0xf]
    %v767 = vld [vmem:[%s752 + $0x38] sm:$0xf]
    %v768 = vld [vmem:[%s752 + $0x3c] sm:$0xf]
    %v769 = vpack.c.bf16 %v751, %v751
    %v770 = vld [vmem:[%s7 + $0xa] sm:$0x1]
    %v771 = vlaneseq
    %v772 = vshrl.u32 %v771, 7
    %v773 = vsub.s32 0, %v772
    %v774 = vrot.slane %v770, %v773
    %v791 = vunpack.c.l.b16 %v753
    %v792 = vunpack.c.l.b16 %v754
    %v793 = vunpack.c.l.b16 %v755
    %v794 = vunpack.c.l.b16 %v756
    %v795 = vunpack.c.l.b16 %v757
    %v796 = vunpack.c.l.b16 %v758
    %v797 = vunpack.c.l.b16 %v759
    %v798 = vunpack.c.l.b16 %v760
    %v799 = vunpack.c.l.b16 %v761
    %v800 = vunpack.c.l.b16 %v762
    %v801 = vunpack.c.l.b16 %v763
    %v802 = vunpack.c.l.b16 %v764
    %v803 = vunpack.c.l.b16 %v765
    %v804 = vunpack.c.l.b16 %v766
    %v805 = vunpack.c.l.b16 %v767
    %v806 = vunpack.c.l.b16 %v768
    %v807 = vpack.c.b16 %v792, %v791
    %v808 = vpack.c.b16 %v794, %v793
    %v809 = vpack.c.b16 %v796, %v795
    %v810 = vpack.c.b16 %v798, %v797
    %v811 = vpack.c.b16 %v800, %v799
    %v812 = vpack.c.b16 %v802, %v801
    %v813 = vpack.c.b16 %v804, %v803
    %v814 = vpack.c.b16 %v806, %v805
    %823 = vmatprep.subr.bf16.mxu0 0
    %824 = vmatpush1.bf16.msra.mxu0 %v807
    %825 = vmatprep.subr.bf16.mxu0 0
    %826 = vmatpush1.bf16.msra.mxu0 %v808
    %827 = vmatprep.subr.bf16.mxu0 0
    %828 = vmatpush1.bf16.msra.mxu0 %v809
    %829 = vmatprep.subr.bf16.mxu0 0
    %830 = vmatpush1.bf16.msra.mxu0 %v810
    %831 = vmatprep.subr.bf16.mxu0 0
    %832 = vmatpush1.bf16.msra.mxu0 %v811
    %833 = vmatprep.subr.bf16.mxu0 0
    %834 = vmatpush1.bf16.msra.mxu0 %v812
    %835 = vmatprep.subr.bf16.mxu0 0
    %836 = vmatpush1.bf16.msra.mxu0 %v813
    %837 = vmatprep.subr.bf16.mxu0 0
    %838 = vmatpush1.bf16.msra.mxu0 %v814
    %839 = vmatprep.subr.bf16.mxu0 0
    %840 = vmatpush1.bf16.msra.mxu0 0
    %841 = vmatprep.subr.bf16.mxu0 0
    %842 = vmatpush1.bf16.msra.mxu0 0
    %843 = vmatprep.subr.bf16.mxu0 0
    %844 = vmatpush1.bf16.msra.mxu0 0
    %845 = vmatprep.subr.bf16.mxu0 0
    %846 = vmatpush1.bf16.msra.mxu0 0
    %847 = vmatprep.subr.bf16.mxu0 0
    %848 = vmatpush1.bf16.msra.mxu0 0
    %849 = vmatprep.subr.bf16.mxu0 0
    %850 = vmatpush1.bf16.msra.mxu0 0
    %851 = vmatprep.subr.bf16.mxu0 0
    %852 = vmatpush1.bf16.msra.mxu0 0
    %853 = vmatprep.subr.bf16.mxu0 0
    %854 = vmatpush1.bf16.msra.mxu0 0
    %855 = vmatprep.mubr.bf16.mxu0 0
    %856 = vmatmul.mubr.bf16.gmra.mrb[0].mxu0 %v769
    %v857 = vpop.f32.mrb[0].mxu0
    %v858 = vadd.f32 %v774, %v857
    %v859 = vpop.f32.mrb[0].mxu0
    %v860 = vpop.f32.mrb[0].mxu0
    %v861 = vpop.f32.mrb[0].mxu0
    %862 = vdwg.mxu0
    %v863 = vmax.f32 %v858, 0.0
    %s864 = scalar_lea.vmem %s6, 448
    %v865 = vld [vmem:[%s864] sm:$0xf]
    %v866 = vld [vmem:[%s864 + $0x4] sm:$0xf]
    %v867 = vld [vmem:[%s864 + $0x8] sm:$0xf]
    %v868 = vld [vmem:[%s864 + $0xc] sm:$0xf]
    %v869 = vld [vmem:[%s864 + $0x10] sm:$0xf]
    %v870 = vld [vmem:[%s864 + $0x14] sm:$0xf]
    %v871 = vld [vmem:[%s864 + $0x18] sm:$0xf]
    %v872 = vld [vmem:[%s864 + $0x1c] sm:$0xf]
    %v873 = vld [vmem:[%s864 + $0x20] sm:$0xf]
    %v874 = vld [vmem:[%s864 + $0x24] sm:$0xf]
    %v875 = vld [vmem:[%s864 + $0x28] sm:$0xf]
    %v876 = vld [vmem:[%s864 + $0x2c] sm:$0xf]
    %v877 = vld [vmem:[%s864 + $0x30] sm:$0xf]
    %v878 = vld [vmem:[%s864 + $0x34] sm:$0xf]
    %v879 = vld [vmem:[%s864 + $0x38] sm:$0xf]
    %v880 = vld [vmem:[%s864 + $0x3c] sm:$0xf]
    %v881 = vpack.c.bf16 %v863, %v863
    %v882 = vld [vmem:[%s7 + $0xb] sm:$0x1]
    %v883 = vlaneseq
    %v884 = vshrl.u32 %v883, 7
    %v885 = vsub.s32 0, %v884
    %v886 = vrot.slane %v882, %v885
    %v903 = vunpack.c.l.b16 %v865
    %v904 = vunpack.c.l.b16 %v866
    %v905 = vunpack.c.l.b16 %v867
    %v906 = vunpack.c.l.b16 %v868
    %v907 = vunpack.c.l.b16 %v869
    %v908 = vunpack.c.l.b16 %v870
    %v909 = vunpack.c.l.b16 %v871
    %v910 = vunpack.c.l.b16 %v872
    %v911 = vunpack.c.l.b16 %v873
    %v912 = vunpack.c.l.b16 %v874
    %v913 = vunpack.c.l.b16 %v875
    %v914 = vunpack.c.l.b16 %v876
    %v915 = vunpack.c.l.b16 %v877
    %v916 = vunpack.c.l.b16 %v878
    %v917 = vunpack.c.l.b16 %v879
    %v918 = vunpack.c.l.b16 %v880
    %v919 = vpack.c.b16 %v904, %v903
    %v920 = vpack.c.b16 %v906, %v905
    %v921 = vpack.c.b16 %v908, %v907
    %v922 = vpack.c.b16 %v910, %v909
    %v923 = vpack.c.b16 %v912, %v911
    %v924 = vpack.c.b16 %v914, %v913
    %v925 = vpack.c.b16 %v916, %v915
    %v926 = vpack.c.b16 %v918, %v917
    %935 = vmatprep.subr.bf16.mxu0 0
    %936 = vmatpush1.bf16.msra.mxu0 %v919
    %937 = vmatprep.subr.bf16.mxu0 0
    %938 = vmatpush1.bf16.msra.mxu0 %v920
    %939 = vmatprep.subr.bf16.mxu0 0
    %940 = vmatpush1.bf16.msra.mxu0 %v921
    %941 = vmatprep.subr.bf16.mxu0 0
    %942 = vmatpush1.bf16.msra.mxu0 %v922
    %943 = vmatprep.subr.bf16.mxu0 0
    %944 = vmatpush1.bf16.msra.mxu0 %v923
    %945 = vmatprep.subr.bf16.mxu0 0
    %946 = vmatpush1.bf16.msra.mxu0 %v924
    %947 = vmatprep.subr.bf16.mxu0 0
    %948 = vmatpush1.bf16.msra.mxu0 %v925
    %949 = vmatprep.subr.bf16.mxu0 0
    %950 = vmatpush1.bf16.msra.mxu0 %v926
    %951 = vmatprep.subr.bf16.mxu0 0
    %952 = vmatpush1.bf16.msra.mxu0 0
    %953 = vmatprep.subr.bf16.mxu0 0
    %954 = vmatpush1.bf16.msra.mxu0 0
    %955 = vmatprep.subr.bf16.mxu0 0
    %956 = vmatpush1.bf16.msra.mxu0 0
    %957 = vmatprep.subr.bf16.mxu0 0
    %958 = vmatpush1.bf16.msra.mxu0 0
    %959 = vmatprep.subr.bf16.mxu0 0
    %960 = vmatpush1.bf16.msra.mxu0 0
    %961 = vmatprep.subr.bf16.mxu0 0
    %962 = vmatpush1.bf16.msra.mxu0 0
    %963 = vmatprep.subr.bf16.mxu0 0
    %964 = vmatpush1.bf16.msra.mxu0 0
    %965 = vmatprep.subr.bf16.mxu0 0
    %966 = vmatpush1.bf16.msra.mxu0 0
    %967 = vmatprep.mubr.bf16.mxu0 0
    %968 = vmatmul.mubr.bf16.gmra.mrb[0].mxu0 %v881
    %v969 = vpop.f32.mrb[0].mxu0
    %v970 = vadd.f32 %v886, %v969
    %v971 = vpop.f32.mrb[0].mxu0
    %v972 = vpop.f32.mrb[0].mxu0
    %v973 = vpop.f32.mrb[0].mxu0
    %974 = vdwg.mxu0
    %v975 = vmax.f32 %v970, 0.0
    %s976 = scalar_lea.vmem %s6, 512
    %v977 = vld [vmem:[%s976] sm:$0xf]
    %v978 = vld [vmem:[%s976 + $0x4] sm:$0xf]
    %v979 = vld [vmem:[%s976 + $0x8] sm:$0xf]
    %v980 = vld [vmem:[%s976 + $0xc] sm:$0xf]
    %v981 = vld [vmem:[%s976 + $0x10] sm:$0xf]
    %v982 = vld [vmem:[%s976 + $0x14] sm:$0xf]
    %v983 = vld [vmem:[%s976 + $0x18] sm:$0xf]
    %v984 = vld [vmem:[%s976 + $0x1c] sm:$0xf]
    %v985 = vld [vmem:[%s976 + $0x20] sm:$0xf]
    %v986 = vld [vmem:[%s976 + $0x24] sm:$0xf]
    %v987 = vld [vmem:[%s976 + $0x28] sm:$0xf]
    %v988 = vld [vmem:[%s976 + $0x2c] sm:$0xf]
    %v989 = vld [vmem:[%s976 + $0x30] sm:$0xf]
    %v990 = vld [vmem:[%s976 + $0x34] sm:$0xf]
    %v991 = vld [vmem:[%s976 + $0x38] sm:$0xf]
    %v992 = vld [vmem:[%s976 + $0x3c] sm:$0xf]
    %v1009 = vunpack.c.l.b16 %v977
    %v1010 = vunpack.c.l.b16 %v978
    %v1011 = vunpack.c.l.b16 %v979
    %v1012 = vunpack.c.l.b16 %v980
    %v1013 = vunpack.c.l.b16 %v981
    %v1014 = vunpack.c.l.b16 %v982
    %v1015 = vunpack.c.l.b16 %v983
    %v1016 = vunpack.c.l.b16 %v984
    %v1017 = vunpack.c.l.b16 %v985
    %v1018 = vunpack.c.l.b16 %v986
    %v1019 = vunpack.c.l.b16 %v987
    %v1020 = vunpack.c.l.b16 %v988
    %v1021 = vunpack.c.l.b16 %v989
    %v1022 = vunpack.c.l.b16 %v990
    %v1023 = vunpack.c.l.b16 %v991
    %v1024 = vunpack.c.l.b16 %v992
    %v1025 = vpack.c.b16 %v1010, %v1009
    %v1026 = vpack.c.b16 %v1012, %v1011
    %v1027 = vpack.c.b16 %v1014, %v1013
    %v1028 = vpack.c.b16 %v1016, %v1015
    %v1029 = vpack.c.b16 %v1018, %v1017
    %v1030 = vpack.c.b16 %v1020, %v1019
    %v1031 = vpack.c.b16 %v1022, %v1021
    %v1032 = vpack.c.b16 %v1024, %v1023
    %1041 = vmatprep.subr.bf16.mxu0 0
    %1042 = vmatpush1.bf16.msra.mxu0 %v1025
    %1043 = vmatprep.subr.bf16.mxu0 0
    %1044 = vmatpush1.bf16.msra.mxu0 %v1026
    %1045 = vmatprep.subr.bf16.mxu0 0
    %1046 = vmatpush1.bf16.msra.mxu0 %v1027
    %1047 = vmatprep.subr.bf16.mxu0 0
    %1048 = vmatpush1.bf16.msra.mxu0 %v1028
    %1049 = vmatprep.subr.bf16.mxu0 0
    %1050 = vmatpush1.bf16.msra.mxu0 %v1029
    %1051 = vmatprep.subr.bf16.mxu0 0
    %1052 = vmatpush1.bf16.msra.mxu0 %v1030
    %1053 = vmatprep.subr.bf16.mxu0 0
    %1054 = vmatpush1.bf16.msra.mxu0 %v1031
    %1055 = vmatprep.subr.bf16.mxu0 0
    %1056 = vmatpush1.bf16.msra.mxu0 %v1032
    %1057 = vmatprep.subr.bf16.mxu0 0
    %1058 = vmatpush1.bf16.msra.mxu0 0
    %1059 = vmatprep.subr.bf16.mxu0 0
    %1060 = vmatpush1.bf16.msra.mxu0 0
    %1061 = vmatprep.subr.bf16.mxu0 0
    %1062 = vmatpush1.bf16.msra.mxu0 0
    %1063 = vmatprep.subr.bf16.mxu0 0
    %1064 = vmatpush1.bf16.msra.mxu0 0
    %1065 = vmatprep.subr.bf16.mxu0 0
    %1066 = vmatpush1.bf16.msra.mxu0 0
    %1067 = vmatprep.subr.bf16.mxu0 0
    %1068 = vmatpush1.bf16.msra.mxu0 0
    %1069 = vmatprep.subr.bf16.mxu0 0
    %1070 = vmatpush1.bf16.msra.mxu0 0
    %1071 = vmatprep.subr.bf16.mxu0 0
    %1072 = vmatpush1.bf16.msra.mxu0 0
    %1073 = vmatprep.mubr.bf16.mxu0 0
    %1074 = vmatmul.mubr.bf16.gmra.mrb[0].mxu0 %v640
    %v1075 = vpop.f32.mrb[0].mxu0
    %v1076 = vadd.f32 0.0, %v1075
    %v1077 = vpop.f32.mrb[0].mxu0
    %v1078 = vpop.f32.mrb[0].mxu0
    %v1079 = vpop.f32.mrb[0].mxu0
    %1080 = vdwg.mxu0
    %v1081 = vadd.f32 %v975, %v1076
    %v1082 = vld [vmem:[%s7 + $0xc] sm:$0x1]
    %v1083 = vlaneseq
    %v1084 = vshrl.u32 %v1083, 7
    %v1085 = vsub.s32 0, %v1084
    %v1086 = vrot.slane %v1082, %v1085
    %v1087 = vadd.f32 %v1081, %v1086
    %s1088 = scalar_lea.vmem %s6, 64
    %v1089 = vld [vmem:[%s1088] sm:$0xf]
    %v1090 = vld [vmem:[%s1088 + $0x4] sm:$0xf]
    %v1091 = vld [vmem:[%s1088 + $0x8] sm:$0xf]
    %v1092 = vld [vmem:[%s1088 + $0xc] sm:$0xf]
    %v1093 = vld [vmem:[%s1088 + $0x10] sm:$0xf]
    %v1094 = vld [vmem:[%s1088 + $0x14] sm:$0xf]
    %v1095 = vld [vmem:[%s1088 + $0x18] sm:$0xf]
    %v1096 = vld [vmem:[%s1088 + $0x1c] sm:$0xf]
    %v1097 = vld [vmem:[%s1088 + $0x20] sm:$0xf]
    %v1098 = vld [vmem:[%s1088 + $0x24] sm:$0xf]
    %v1099 = vld [vmem:[%s1088 + $0x28] sm:$0xf]
    %v1100 = vld [vmem:[%s1088 + $0x2c] sm:$0xf]
    %v1101 = vld [vmem:[%s1088 + $0x30] sm:$0xf]
    %v1102 = vld [vmem:[%s1088 + $0x34] sm:$0xf]
    %v1103 = vld [vmem:[%s1088 + $0x38] sm:$0xf]
    %v1104 = vld [vmem:[%s1088 + $0x3c] sm:$0xf]
    %v1105 = vld [vmem:[%s7 + $0x5] sm:$0x1]
    %v1106 = vlaneseq
    %v1107 = vshrl.u32 %v1106, 7
    %v1108 = vsub.s32 0, %v1107
    %v1109 = vrot.slane %v1105, %v1108
    %v1126 = vunpack.c.l.b16 %v1089
    %v1127 = vunpack.c.l.b16 %v1090
    %v1128 = vunpack.c.l.b16 %v1091
    %v1129 = vunpack.c.l.b16 %v1092
    %v1130 = vunpack.c.l.b16 %v1093
    %v1131 = vunpack.c.l.b16 %v1094
    %v1132 = vunpack.c.l.b16 %v1095
    %v1133 = vunpack.c.l.b16 %v1096
    %v1134 = vunpack.c.l.b16 %v1097
    %v1135 = vunpack.c.l.b16 %v1098
    %v1136 = vunpack.c.l.b16 %v1099
    %v1137 = vunpack.c.l.b16 %v1100
    %v1138 = vunpack.c.l.b16 %v1101
    %v1139 = vunpack.c.l.b16 %v1102
    %v1140 = vunpack.c.l.b16 %v1103
    %v1141 = vunpack.c.l.b16 %v1104
    %v1142 = vpack.c.b16 %v1127, %v1126
    %v1143 = vpack.c.b16 %v1129, %v1128
    %v1144 = vpack.c.b16 %v1131, %v1130
    %v1145 = vpack.c.b16 %v1133, %v1132
    %v1146 = vpack.c.b16 %v1135, %v1134
    %v1147 = vpack.c.b16 %v1137, %v1136
    %v1148 = vpack.c.b16 %v1139, %v1138
    %v1149 = vpack.c.b16 %v1141, %v1140
    %1158 = vmatprep.subr.bf16.mxu0 0
    %1159 = vmatpush1.bf16.msra.mxu0 %v1142
    %1160 = vmatprep.subr.bf16.mxu0 0
    %1161 = vmatpush1.bf16.msra.mxu0 %v1143
    %1162 = vmatprep.subr.bf16.mxu0 0
    %1163 = vmatpush1.bf16.msra.mxu0 %v1144
    %1164 = vmatprep.subr.bf16.mxu0 0
    %1165 = vmatpush1.bf16.msra.mxu0 %v1145
    %1166 = vmatprep.subr.bf16.mxu0 0
    %1167 = vmatpush1.bf16.msra.mxu0 %v1146
    %1168 = vmatprep.subr.bf16.mxu0 0
    %1169 = vmatpush1.bf16.msra.mxu0 %v1147
    %1170 = vmatprep.subr.bf16.mxu0 0
    %1171 = vmatpush1.bf16.msra.mxu0 %v1148
    %1172 = vmatprep.subr.bf16.mxu0 0
    %1173 = vmatpush1.bf16.msra.mxu0 %v1149
    %1174 = vmatprep.subr.bf16.mxu0 0
    %1175 = vmatpush1.bf16.msra.mxu0 0
    %1176 = vmatprep.subr.bf16.mxu0 0
    %1177 = vmatpush1.bf16.msra.mxu0 0
    %1178 = vmatprep.subr.bf16.mxu0 0
    %1179 = vmatpush1.bf16.msra.mxu0 0
    %1180 = vmatprep.subr.bf16.mxu0 0
    %1181 = vmatpush1.bf16.msra.mxu0 0
    %1182 = vmatprep.subr.bf16.mxu0 0
    %1183 = vmatpush1.bf16.msra.mxu0 0
    %1184 = vmatprep.subr.bf16.mxu0 0
    %1185 = vmatpush1.bf16.msra.mxu0 0
    %1186 = vmatprep.subr.bf16.mxu0 0
    %1187 = vmatpush1.bf16.msra.mxu0 0
    %1188 = vmatprep.subr.bf16.mxu0 0
    %1189 = vmatpush1.bf16.msra.mxu0 0
    %1190 = vmatprep.mubr.bf16.mxu0 0
    %1191 = vmatmul.mubr.bf16.gmra.mrb[0].mxu0 %v592
    %v1192 = vpop.f32.mrb[0].mxu0
    %v1193 = vadd.f32 %v1109, %v1192
    %v1194 = vpop.f32.mrb[0].mxu0
    %v1195 = vpop.f32.mrb[0].mxu0
    %v1196 = vadd.f32 %v1109, %v1195
    %v1197 = vpop.f32.mrb[0].mxu0
    %1198 = vmatprep.mubr.bf16.mxu0 0
    %1199 = vmatmul.mubr.bf16.gmra.mrb[0].mxu0 %v593
    %v1200 = vpop.f32.mrb[0].mxu0
    %v1201 = vadd.f32 %v1109, %v1200
    %v1202 = vpop.f32.mrb[0].mxu0
    %v1203 = vpop.f32.mrb[0].mxu0
    %v1204 = vadd.f32 %v1109, %v1203
    %v1205 = vpop.f32.mrb[0].mxu0
    %1206 = vmatprep.mubr.bf16.mxu0 0
    %1207 = vmatmul.mubr.bf16.gmra.mrb[0].mxu0 %v594
    %v1208 = vpop.f32.mrb[0].mxu0
    %v1209 = vadd.f32 %v1109, %v1208
    %v1210 = vpop.f32.mrb[0].mxu0
    %v1211 = vpop.f32.mrb[0].mxu0
    %v1212 = vadd.f32 %v1109, %v1211
    %v1213 = vpop.f32.mrb[0].mxu0
    %1214 = vmatprep.mubr.bf16.mxu0 0
    %1215 = vmatmul.mubr.bf16.gmra.mrb[0].mxu0 %v595
    %v1216 = vpop.f32.mrb[0].mxu0
    %v1217 = vadd.f32 %v1109, %v1216
    %v1218 = vpop.f32.mrb[0].mxu0
    %v1219 = vpop.f32.mrb[0].mxu0
    %v1220 = vadd.f32 %v1109, %v1219
    %v1221 = vpop.f32.mrb[0].mxu0
    %1222 = vdwg.mxu0
    %v1223 = vmax.f32 %v1193, 0.0
    %v1224 = vmax.f32 %v1196, 0.0
    %v1225 = vmax.f32 %v1201, 0.0
    %v1226 = vmax.f32 %v1204, 0.0
    %v1227 = vmax.f32 %v1209, 0.0
    %v1228 = vmax.f32 %v1212, 0.0
    %v1229 = vmax.f32 %v1217, 0.0
    %v1230 = vmax.f32 %v1220, 0.0
    %s1231 = scalar_lea.vmem %s6, 128
    %v1232 = vld [vmem:[%s1231] sm:$0xf]
    %v1233 = vld [vmem:[%s1231 + $0x4] sm:$0xf]
    %v1234 = vld [vmem:[%s1231 + $0x8] sm:$0xf]
    %v1235 = vld [vmem:[%s1231 + $0xc] sm:$0xf]
    %v1236 = vld [vmem:[%s1231 + $0x10] sm:$0xf]
    %v1237 = vld [vmem:[%s1231 + $0x14] sm:$0xf]
    %v1238 = vld [vmem:[%s1231 + $0x18] sm:$0xf]
    %v1239 = vld [vmem:[%s1231 + $0x1c] sm:$0xf]
    %v1240 = vld [vmem:[%s1231 + $0x20] sm:$0xf]
    %v1241 = vld [vmem:[%s1231 + $0x24] sm:$0xf]
    %v1242 = vld [vmem:[%s1231 + $0x28] sm:$0xf]
    %v1243 = vld [vmem:[%s1231 + $0x2c] sm:$0xf]
    %v1244 = vld [vmem:[%s1231 + $0x30] sm:$0xf]
    %v1245 = vld [vmem:[%s1231 + $0x34] sm:$0xf]
    %v1246 = vld [vmem:[%s1231 + $0x38] sm:$0xf]
    %v1247 = vld [vmem:[%s1231 + $0x3c] sm:$0xf]
    %v1248 = vpack.c.bf16 %v1224, %v1223
    %v1249 = vpack.c.bf16 %v1226, %v1225
    %v1250 = vpack.c.bf16 %v1228, %v1227
    %v1251 = vpack.c.bf16 %v1230, %v1229
    %v1252 = vld [vmem:[%s7 + $0x6] sm:$0x1]
    %v1253 = vlaneseq
    %v1254 = vshrl.u32 %v1253, 7
    %v1255 = vsub.s32 0, %v1254
    %v1256 = vrot.slane %v1252, %v1255
    %v1273 = vunpack.c.l.b16 %v1232
    %v1274 = vunpack.c.l.b16 %v1233
    %v1275 = vunpack.c.l.b16 %v1234
    %v1276 = vunpack.c.l.b16 %v1235
    %v1277 = vunpack.c.l.b16 %v1236
    %v1278 = vunpack.c.l.b16 %v1237
    %v1279 = vunpack.c.l.b16 %v1238
    %v1280 = vunpack.c.l.b16 %v1239
    %v1281 = vunpack.c.l.b16 %v1240
    %v1282 = vunpack.c.l.b16 %v1241
    %v1283 = vunpack.c.l.b16 %v1242
    %v1284 = vunpack.c.l.b16 %v1243
    %v1285 = vunpack.c.l.b16 %v1244
    %v1286 = vunpack.c.l.b16 %v1245
    %v1287 = vunpack.c.l.b16 %v1246
    %v1288 = vunpack.c.l.b16 %v1247
    %v1289 = vpack.c.b16 %v1274, %v1273
    %v1290 = vpack.c.b16 %v1276, %v1275
    %v1291 = vpack.c.b16 %v1278, %v1277
    %v1292 = vpack.c.b16 %v1280, %v1279
    %v1293 = vpack.c.b16 %v1282, %v1281
    %v1294 = vpack.c.b16 %v1284, %v1283
    %v1295 = vpack.c.b16 %v1286, %v1285
    %v1296 = vpack.c.b16 %v1288, %v1287
    %1305 = vmatprep.subr.bf16.mxu0 0
    %1306 = vmatpush1.bf16.msra.mxu0 %v1289
    %1307 = vmatprep.subr.bf16.mxu0 0
    %1308 = vmatpush1.bf16.msra.mxu0 %v1290
    %1309 = vmatprep.subr.bf16.mxu0 0
    %1310 = vmatpush1.bf16.msra.mxu0 %v1291
    %1311 = vmatprep.subr.bf16.mxu0 0
    %1312 = vmatpush1.bf16.msra.mxu0 %v1292
    %1313 = vmatprep.subr.bf16.mxu0 0
    %1314 = vmatpush1.bf16.msra.mxu0 %v1293
    %1315 = vmatprep.subr.bf16.mxu0 0
    %1316 = vmatpush1.bf16.msra.mxu0 %v1294
    %1317 = vmatprep.subr.bf16.mxu0 0
    %1318 = vmatpush1.bf16.msra.mxu0 %v1295
    %1319 = vmatprep.subr.bf16.mxu0 0
    %1320 = vmatpush1.bf16.msra.mxu0 %v1296
    %1321 = vmatprep.subr.bf16.mxu0 0
    %1322 = vmatpush1.bf16.msra.mxu0 0
    %1323 = vmatprep.subr.bf16.mxu0 0
    %1324 = vmatpush1.bf16.msra.mxu0 0
    %1325 = vmatprep.subr.bf16.mxu0 0
    %1326 = vmatpush1.bf16.msra.mxu0 0
    %1327 = vmatprep.subr.bf16.mxu0 0
    %1328 = vmatpush1.bf16.msra.mxu0 0
    %1329 = vmatprep.subr.bf16.mxu0 0
    %1330 = vmatpush1.bf16.msra.mxu0 0
    %1331 = vmatprep.subr.bf16.mxu0 0
    %1332 = vmatpush1.bf16.msra.mxu0 0
    %1333 = vmatprep.subr.bf16.mxu0 0
    %1334 = vmatpush1.bf16.msra.mxu0 0
    %1335 = vmatprep.subr.bf16.mxu0 0
    %1336 = vmatpush1.bf16.msra.mxu0 0
    %1337 = vmatprep.mubr.bf16.mxu0 0
    %1338 = vmatmul.mubr.bf16.gmra.mrb[0].mxu0 %v1248
    %v1339 = vpop.f32.mrb[0].mxu0
    %v1340 = vadd.f32 %v1256, %v1339
    %v1341 = vpop.f32.mrb[0].mxu0
    %v1342 = vpop.f32.mrb[0].mxu0
    %v1343 = vadd.f32 %v1256, %v1342
    %v1344 = vpop.f32.mrb[0].mxu0
    %1345 = vmatprep.mubr.bf16.mxu0 0
    %1346 = vmatmul.mubr.bf16.gmra.mrb[0].mxu0 %v1249
    %v1347 = vpop.f32.mrb[0].mxu0
    %v1348 = vadd.f32 %v1256, %v1347
    %v1349 = vpop.f32.mrb[0].mxu0
    %v1350 = vpop.f32.mrb[0].mxu0
    %v1351 = vadd.f32 %v1256, %v1350
    %v1352 = vpop.f32.mrb[0].mxu0
    %1353 = vmatprep.mubr.bf16.mxu0 0
    %1354 = vmatmul.mubr.bf16.gmra.mrb[0].mxu0 %v1250
    %v1355 = vpop.f32.mrb[0].mxu0
    %v1356 = vadd.f32 %v1256, %v1355
    %v1357 = vpop.f32.mrb[0].mxu0
    %v1358 = vpop.f32.mrb[0].mxu0
    %v1359 = vadd.f32 %v1256, %v1358
    %v1360 = vpop.f32.mrb[0].mxu0
    %1361 = vmatprep.mubr.bf16.mxu0 0
    %1362 = vmatmul.mubr.bf16.gmra.mrb[0].mxu0 %v1251
    %v1363 = vpop.f32.mrb[0].mxu0
    %v1364 = vadd.f32 %v1256, %v1363
    %v1365 = vpop.f32.mrb[0].mxu0
    %v1366 = vpop.f32.mrb[0].mxu0
    %v1367 = vadd.f32 %v1256, %v1366
    %v1368 = vpop.f32.mrb[0].mxu0
    %1369 = vdwg.mxu0
    %v1370 = vmax.f32 %v1340, 0.0
    %v1371 = vmax.f32 %v1343, 0.0
    %v1372 = vmax.f32 %v1348, 0.0
    %v1373 = vmax.f32 %v1351, 0.0
    %v1374 = vmax.f32 %v1356, 0.0
    %v1375 = vmax.f32 %v1359, 0.0
    %v1376 = vmax.f32 %v1364, 0.0
    %v1377 = vmax.f32 %v1367, 0.0
    %s1378 = scalar_lea.vmem %s6, 192
    %v1379 = vld [vmem:[%s1378] sm:$0xf]
    %v1380 = vld [vmem:[%s1378 + $0x4] sm:$0xf]
    %v1381 = vld [vmem:[%s1378 + $0x8] sm:$0xf]
    %v1382 = vld [vmem:[%s1378 + $0xc] sm:$0xf]
    %v1383 = vld [vmem:[%s1378 + $0x10] sm:$0xf]
    %v1384 = vld [vmem:[%s1378 + $0x14] sm:$0xf]
    %v1385 = vld [vmem:[%s1378 + $0x18] sm:$0xf]
    %v1386 = vld [vmem:[%s1378 + $0x1c] sm:$0xf]
    %v1387 = vld [vmem:[%s1378 + $0x20] sm:$0xf]
    %v1388 = vld [vmem:[%s1378 + $0x24] sm:$0xf]
    %v1389 = vld [vmem:[%s1378 + $0x28] sm:$0xf]
    %v1390 = vld [vmem:[%s1378 + $0x2c] sm:$0xf]
    %v1391 = vld [vmem:[%s1378 + $0x30] sm:$0xf]
    %v1392 = vld [vmem:[%s1378 + $0x34] sm:$0xf]
    %v1393 = vld [vmem:[%s1378 + $0x38] sm:$0xf]
    %v1394 = vld [vmem:[%s1378 + $0x3c] sm:$0xf]
    %v1395 = vpack.c.bf16 %v1371, %v1370
    %v1396 = vpack.c.bf16 %v1373, %v1372
    %v1397 = vpack.c.bf16 %v1375, %v1374
    %v1398 = vpack.c.bf16 %v1377, %v1376
    %v1399 = vld [vmem:[%s7 + $0x7] sm:$0x1]
    %v1400 = vlaneseq
    %v1401 = vshrl.u32 %v1400, 7
    %v1402 = vsub.s32 0, %v1401
    %v1403 = vrot.slane %v1399, %v1402
    %v1420 = vunpack.c.l.b16 %v1379
    %v1421 = vunpack.c.l.b16 %v1380
    %v1422 = vunpack.c.l.b16 %v1381
    %v1423 = vunpack.c.l.b16 %v1382
    %v1424 = vunpack.c.l.b16 %v1383
    %v1425 = vunpack.c.l.b16 %v1384
    %v1426 = vunpack.c.l.b16 %v1385
    %v1427 = vunpack.c.l.b16 %v1386
    %v1428 = vunpack.c.l.b16 %v1387
    %v1429 = vunpack.c.l.b16 %v1388
    %v1430 = vunpack.c.l.b16 %v1389
    %v1431 = vunpack.c.l.b16 %v1390
    %v1432 = vunpack.c.l.b16 %v1391
    %v1433 = vunpack.c.l.b16 %v1392
    %v1434 = vunpack.c.l.b16 %v1393
    %v1435 = vunpack.c.l.b16 %v1394
    %v1436 = vpack.c.b16 %v1421, %v1420
    %v1437 = vpack.c.b16 %v1423, %v1422
    %v1438 = vpack.c.b16 %v1425, %v1424
    %v1439 = vpack.c.b16 %v1427, %v1426
    %v1440 = vpack.c.b16 %v1429, %v1428
    %v1441 = vpack.c.b16 %v1431, %v1430
    %v1442 = vpack.c.b16 %v1433, %v1432
    %v1443 = vpack.c.b16 %v1435, %v1434
    %1452 = vmatprep.subr.bf16.mxu0 0
    %1453 = vmatpush1.bf16.msra.mxu0 %v1436
    %1454 = vmatprep.subr.bf16.mxu0 0
    %1455 = vmatpush1.bf16.msra.mxu0 %v1437
    %1456 = vmatprep.subr.bf16.mxu0 0
    %1457 = vmatpush1.bf16.msra.mxu0 %v1438
    %1458 = vmatprep.subr.bf16.mxu0 0
    %1459 = vmatpush1.bf16.msra.mxu0 %v1439
    %1460 = vmatprep.subr.bf16.mxu0 0
    %1461 = vmatpush1.bf16.msra.mxu0 %v1440
    %1462 = vmatprep.subr.bf16.mxu0 0
    %1463 = vmatpush1.bf16.msra.mxu0 %v1441
    %1464 = vmatprep.subr.bf16.mxu0 0
    %1465 = vmatpush1.bf16.msra.mxu0 %v1442
    %1466 = vmatprep.subr.bf16.mxu0 0
    %1467 = vmatpush1.bf16.msra.mxu0 %v1443
    %1468 = vmatprep.subr.bf16.mxu0 0
    %1469 = vmatpush1.bf16.msra.mxu0 0
    %1470 = vmatprep.subr.bf16.mxu0 0
    %1471 = vmatpush1.bf16.msra.mxu0 0
    %1472 = vmatprep.subr.bf16.mxu0 0
    %1473 = vmatpush1.bf16.msra.mxu0 0
    %1474 = vmatprep.subr.bf16.mxu0 0
    %1475 = vmatpush1.bf16.msra.mxu0 0
    %1476 = vmatprep.subr.bf16.mxu0 0
    %1477 = vmatpush1.bf16.msra.mxu0 0
    %1478 = vmatprep.subr.bf16.mxu0 0
    %1479 = vmatpush1.bf16.msra.mxu0 0
    %1480 = vmatprep.subr.bf16.mxu0 0
    %1481 = vmatpush1.bf16.msra.mxu0 0
    %1482 = vmatprep.subr.bf16.mxu0 0
    %1483 = vmatpush1.bf16.msra.mxu0 0
    %1484 = vmatprep.mubr.bf16.mxu0 0
    %1485 = vmatmul.mubr.bf16.gmra.mrb[0].mxu0 %v1395
    %v1486 = vpop.f32.mrb[0].mxu0
    %v1487 = vadd.f32 %v1403, %v1486
    %v1488 = vpop.f32.mrb[0].mxu0
    %v1489 = vpop.f32.mrb[0].mxu0
    %v1490 = vadd.f32 %v1403, %v1489
    %v1491 = vpop.f32.mrb[0].mxu0
    %1492 = vmatprep.mubr.bf16.mxu0 0
    %1493 = vmatmul.mubr.bf16.gmra.mrb[0].mxu0 %v1396
    %v1494 = vpop.f32.mrb[0].mxu0
    %v1495 = vadd.f32 %v1403, %v1494
    %v1496 = vpop.f32.mrb[0].mxu0
    %v1497 = vpop.f32.mrb[0].mxu0
    %v1498 = vadd.f32 %v1403, %v1497
    %v1499 = vpop.f32.mrb[0].mxu0
    %1500 = vmatprep.mubr.bf16.mxu0 0
    %1501 = vmatmul.mubr.bf16.gmra.mrb[0].mxu0 %v1397
    %v1502 = vpop.f32.mrb[0].mxu0
    %v1503 = vadd.f32 %v1403, %v1502
    %v1504 = vpop.f32.mrb[0].mxu0
    %v1505 = vpop.f32.mrb[0].mxu0
    %v1506 = vadd.f32 %v1403, %v1505
    %v1507 = vpop.f32.mrb[0].mxu0
    %1508 = vmatprep.mubr.bf16.mxu0 0
    %1509 = vmatmul.mubr.bf16.gmra.mrb[0].mxu0 %v1398
    %v1510 = vpop.f32.mrb[0].mxu0
    %v1511 = vadd.f32 %v1403, %v1510
    %v1512 = vpop.f32.mrb[0].mxu0
    %v1513 = vpop.f32.mrb[0].mxu0
    %v1514 = vadd.f32 %v1403, %v1513
    %v1515 = vpop.f32.mrb[0].mxu0
    %1516 = vdwg.mxu0
    %v1517 = vmax.f32 %v1487, 0.0
    %v1518 = vmax.f32 %v1490, 0.0
    %v1519 = vmax.f32 %v1495, 0.0
    %v1520 = vmax.f32 %v1498, 0.0
    %v1521 = vmax.f32 %v1503, 0.0
    %v1522 = vmax.f32 %v1506, 0.0
    %v1523 = vmax.f32 %v1511, 0.0
    %v1524 = vmax.f32 %v1514, 0.0
    %s1525 = scalar_lea.vmem %s6, 256
    %v1526 = vld [vmem:[%s1525] sm:$0xf]
    %v1527 = vld [vmem:[%s1525 + $0x4] sm:$0xf]
    %v1528 = vld [vmem:[%s1525 + $0x8] sm:$0xf]
    %v1529 = vld [vmem:[%s1525 + $0xc] sm:$0xf]
    %v1530 = vld [vmem:[%s1525 + $0x10] sm:$0xf]
    %v1531 = vld [vmem:[%s1525 + $0x14] sm:$0xf]
    %v1532 = vld [vmem:[%s1525 + $0x18] sm:$0xf]
    %v1533 = vld [vmem:[%s1525 + $0x1c] sm:$0xf]
    %v1534 = vld [vmem:[%s1525 + $0x20] sm:$0xf]
    %v1535 = vld [vmem:[%s1525 + $0x24] sm:$0xf]
    %v1536 = vld [vmem:[%s1525 + $0x28] sm:$0xf]
    %v1537 = vld [vmem:[%s1525 + $0x2c] sm:$0xf]
    %v1538 = vld [vmem:[%s1525 + $0x30] sm:$0xf]
    %v1539 = vld [vmem:[%s1525 + $0x34] sm:$0xf]
    %v1540 = vld [vmem:[%s1525 + $0x38] sm:$0xf]
    %v1541 = vld [vmem:[%s1525 + $0x3c] sm:$0xf]
    %v1558 = vunpack.c.l.b16 %v1526
    %v1559 = vunpack.c.l.b16 %v1527
    %v1560 = vunpack.c.l.b16 %v1528
    %v1561 = vunpack.c.l.b16 %v1529
    %v1562 = vunpack.c.l.b16 %v1530
    %v1563 = vunpack.c.l.b16 %v1531
    %v1564 = vunpack.c.l.b16 %v1532
    %v1565 = vunpack.c.l.b16 %v1533
    %v1566 = vunpack.c.l.b16 %v1534
    %v1567 = vunpack.c.l.b16 %v1535
    %v1568 = vunpack.c.l.b16 %v1536
    %v1569 = vunpack.c.l.b16 %v1537
    %v1570 = vunpack.c.l.b16 %v1538
    %v1571 = vunpack.c.l.b16 %v1539
    %v1572 = vunpack.c.l.b16 %v1540
    %v1573 = vunpack.c.l.b16 %v1541
    %v1574 = vpack.c.b16 %v1559, %v1558
    %v1575 = vpack.c.b16 %v1561, %v1560
    %v1576 = vpack.c.b16 %v1563, %v1562
    %v1577 = vpack.c.b16 %v1565, %v1564
    %v1578 = vpack.c.b16 %v1567, %v1566
    %v1579 = vpack.c.b16 %v1569, %v1568
    %v1580 = vpack.c.b16 %v1571, %v1570
    %v1581 = vpack.c.b16 %v1573, %v1572
    %1590 = vmatprep.subr.bf16.mxu0 0
    %1591 = vmatpush1.bf16.msra.mxu0 %v1574
    %1592 = vmatprep.subr.bf16.mxu0 0
    %1593 = vmatpush1.bf16.msra.mxu0 %v1575
    %1594 = vmatprep.subr.bf16.mxu0 0
    %1595 = vmatpush1.bf16.msra.mxu0 %v1576
    %1596 = vmatprep.subr.bf16.mxu0 0
    %1597 = vmatpush1.bf16.msra.mxu0 %v1577
    %1598 = vmatprep.subr.bf16.mxu0 0
    %1599 = vmatpush1.bf16.msra.mxu0 %v1578
    %1600 = vmatprep.subr.bf16.mxu0 0
    %1601 = vmatpush1.bf16.msra.mxu0 %v1579
    %1602 = vmatprep.subr.bf16.mxu0 0
    %1603 = vmatpush1.bf16.msra.mxu0 %v1580
    %1604 = vmatprep.subr.bf16.mxu0 0
    %1605 = vmatpush1.bf16.msra.mxu0 %v1581
    %1606 = vmatprep.subr.bf16.mxu0 0
    %1607 = vmatpush1.bf16.msra.mxu0 0
    %1608 = vmatprep.subr.bf16.mxu0 0
    %1609 = vmatpush1.bf16.msra.mxu0 0
    %1610 = vmatprep.subr.bf16.mxu0 0
    %1611 = vmatpush1.bf16.msra.mxu0 0
    %1612 = vmatprep.subr.bf16.mxu0 0
    %1613 = vmatpush1.bf16.msra.mxu0 0
    %1614 = vmatprep.subr.bf16.mxu0 0
    %1615 = vmatpush1.bf16.msra.mxu0 0
    %1616 = vmatprep.subr.bf16.mxu0 0
    %1617 = vmatpush1.bf16.msra.mxu0 0
    %1618 = vmatprep.subr.bf16.mxu0 0
    %1619 = vmatpush1.bf16.msra.mxu0 0
    %1620 = vmatprep.subr.bf16.mxu0 0
    %1621 = vmatpush1.bf16.msra.mxu0 0
    %1622 = vmatprep.mubr.bf16.mxu0 0
    %1623 = vmatmul.mubr.bf16.gmra.mrb[0].mxu0 %v592
    %v1624 = vpop.f32.mrb[0].mxu0
    %v1625 = vadd.f32 0.0, %v1624
    %v1626 = vpop.f32.mrb[0].mxu0
    %v1627 = vpop.f32.mrb[0].mxu0
    %v1628 = vadd.f32 0.0, %v1627
    %v1629 = vpop.f32.mrb[0].mxu0
    %1630 = vmatprep.mubr.bf16.mxu0 0
    %1631 = vmatmul.mubr.bf16.gmra.mrb[0].mxu0 %v593
    %v1632 = vpop.f32.mrb[0].mxu0
    %v1633 = vadd.f32 0.0, %v1632
    %v1634 = vpop.f32.mrb[0].mxu0
    %v1635 = vpop.f32.mrb[0].mxu0
    %v1636 = vadd.f32 0.0, %v1635
    %v1637 = vpop.f32.mrb[0].mxu0
    %1638 = vmatprep.mubr.bf16.mxu0 0
    %1639 = vmatmul.mubr.bf16.gmra.mrb[0].mxu0 %v594
    %v1640 = vpop.f32.mrb[0].mxu0
    %v1641 = vadd.f32 0.0, %v1640
    %v1642 = vpop.f32.mrb[0].mxu0
    %v1643 = vpop.f32.mrb[0].mxu0
    %v1644 = vadd.f32 0.0, %v1643
    %v1645 = vpop.f32.mrb[0].mxu0
    %1646 = vmatprep.mubr.bf16.mxu0 0
    %1647 = vmatmul.mubr.bf16.gmra.mrb[0].mxu0 %v595
    %v1648 = vpop.f32.mrb[0].mxu0
    %v1649 = vadd.f32 0.0, %v1648
    %v1650 = vpop.f32.mrb[0].mxu0
    %v1651 = vpop.f32.mrb[0].mxu0
    %v1652 = vadd.f32 0.0, %v1651
    %v1653 = vpop.f32.mrb[0].mxu0
    %1654 = vdwg.mxu0
    %v1655 = vadd.f32 %v1517, %v1625
    %v1656 = vadd.f32 %v1518, %v1628
    %v1657 = vadd.f32 %v1519, %v1633
    %v1658 = vadd.f32 %v1520, %v1636
    %v1659 = vadd.f32 %v1521, %v1641
    %v1660 = vadd.f32 %v1522, %v1644
    %v1661 = vadd.f32 %v1523, %v1649
    %v1662 = vadd.f32 %v1524, %v1652
    %v1663 = vld [vmem:[%s7 + $0x8] sm:$0x1]
    %v1664 = vlaneseq
    %v1665 = vshrl.u32 %v1664, 7
    %v1666 = vsub.s32 0, %v1665
    %v1667 = vrot.slane %v1663, %v1666
    %v1668 = vadd.f32 %v1655, %v1667
    %v1669 = vadd.f32 %v1656, %v1667
    %v1670 = vadd.f32 %v1657, %v1667
    %v1671 = vadd.f32 %v1658, %v1667
    %v1672 = vadd.f32 %v1659, %v1667
    %v1673 = vadd.f32 %v1660, %v1667
    %v1674 = vadd.f32 %v1661, %v1667
    %v1675 = vadd.f32 %v1662, %v1667
    %v1676 = vpack.c.bf16 %v1087, %v1087
    %v1677 = vpack.c.bf16 %v1669, %v1668
    %v1678 = vpack.c.bf16 %v1671, %v1670
    %v1679 = vpack.c.bf16 %v1673, %v1672
    %v1680 = vpack.c.bf16 %v1675, %v1674
    %1681 = vmatprep.subr.bf16.mxu0 0
    %1682 = vmatpush1.bf16.xpose.msra.mxu0 %v1677
    %1683 = vmatprep.subr.bf16.mxu0 0
    %1684 = vmatpush1.bf16.xpose.msra.mxu0 %v1678
    %1685 = vmatprep.subr.bf16.mxu0 0
    %1686 = vmatpush1.bf16.xpose.msra.mxu0 %v1679
    %1687 = vmatprep.subr.bf16.mxu0 0
    %1688 = vmatpush1.bf16.xpose.msra.mxu0 %v1680
    %1689 = vmatprep.subr.bf16.mxu0 0
    %1690 = vmatpush1.bf16.xpose.msra.mxu0 0
    %1691 = vmatprep.subr.bf16.mxu0 0
    %1692 = vmatpush1.bf16.xpose.msra.mxu0 0
    %1693 = vmatprep.subr.bf16.mxu0 0
    %1694 = vmatpush1.bf16.xpose.msra.mxu0 0
    %1695 = vmatprep.subr.bf16.mxu0 0
    %1696 = vmatpush1.bf16.xpose.msra.mxu0 0
    %1697 = vmatprep.subr.bf16.mxu0 0
    %1698 = vmatpush1.bf16.xpose.msra.mxu0 0
    %1699 = vmatprep.subr.bf16.mxu0 0
    %1700 = vmatpush1.bf16.xpose.msra.mxu0 0
    %1701 = vmatprep.subr.bf16.mxu0 0
    %1702 = vmatpush1.bf16.xpose.msra.mxu0 0
    %1703 = vmatprep.subr.bf16.mxu0 0
    %1704 = vmatpush1.bf16.xpose.msra.mxu0 0
    %1705 = vmatprep.subr.bf16.mxu0 0
    %1706 = vmatpush1.bf16.xpose.msra.mxu0 0
    %1707 = vmatprep.subr.bf16.mxu0 0
    %1708 = vmatpush1.bf16.xpose.msra.mxu0 0
    %1709 = vmatprep.subr.bf16.mxu0 0
    %1710 = vmatpush1.bf16.xpose.msra.mxu0 0
    %1711 = vmatprep.subr.bf16.mxu0 0
    %1712 = vmatpush1.bf16.xpose.msra.mxu0 0
    %1713 = vmatprep.mubr.bf16.mxu0 0
    %1714 = vmatmul.mubr.bf16.gmra.mrb[0].mxu0 %v1676
    %v1715 = vpop.f32.mrb[0].mxu0
    %v1716 = vadd.f32 0.0, %v1715
    %v1717 = vpop.f32.mrb[0].mxu0
    %v1718 = vpop.f32.mrb[0].mxu0
    %v1719 = vpop.f32.mrb[0].mxu0
    %1720 = vdwg.mxu0
    %v1721 = vsub.f32 0.0, %v1716
    %v1722 = vmax.f32 %v1721, 0.0
    %v1723 = vand.u32 2147483647, %v1721
    %v1724 = vsub.f32 0.0, %v1723
    %v1725 = vmul.f32 %v1724, 1.442695
    %v1726 = vpow.pop %v1725
    %v1727 = vadd.f32 %v1726, 1.0
    %v1728 = vlog2.pop %v1727
    %v1729 = vmul.f32 %v1728, 0.6931472
    %v1730 = vmul.f32 -0.5, %v1726
    %v1731 = vadd.f32 %v1730, 1.0
    %v1732 = vmul.f32 %v1731, %v1726
    %v1733 = vand.u32 2147483647, %v1726
    %vm1734 = vcmp.lt.f32.partialorder %v1733, 0.0004427343
    %v1735 = vsel %vm1734, %v1732, %v1729
    %v1736 = vadd.f32 %v1722, %v1735
    %v1737 = vsub.f32 0.6931472, %v1736
    %v1738 = vmul.f32 %v49, %v1737
    %vm1739 = vcmask 519168
    %v1740 = vsel %vm1739, %v1738, 0.0
    %1741 = vadd.xlane.f32.xlu0 %v1740
    %v1742 = vpop.xlane.xlu0 %1741
    %v1743 = vrot.slane %v1742, 4
    %v1744 = vadd.f32 %v1742, %v1743
    %v1745 = vrot.slane %v1744, 2
    %v1746 = vadd.f32 %v1744, %v1745
    %v1747 = vrot.slane %v1746, 1
    %v1748 = vadd.f32 %v1746, %v1747
    %s1749 = vtos %v1748
    %v1750 = vstv %s1749
    %v1751 = vsub.f32 1.0, %v49
    %v1752 = vadd.f32 %v1736, %v1716
    %v1753 = vsub.f32 %v1752, 0.6931472
    %v1754 = vmul.f32 %v1751, %v1753
    %v1755 = vsel %vm1739, %v1754, 0.0
    %1756 = vadd.xlane.f32.xlu0 %v1755
    %v1757 = vpop.xlane.xlu0 %1756
    %v1758 = vrot.slane %v1757, 4
    %v1759 = vadd.f32 %v1757, %v1758
    %v1760 = vrot.slane %v1759, 2
    %v1761 = vadd.f32 %v1759, %v1760
    %v1762 = vrot.slane %v1761, 1
    %v1763 = vadd.f32 %v1761, %v1762
    %s1764 = vtos %v1763
    %v1765 = vstv %s1764
    %v1766 = vrcp.pop 192.0
    %v1767 = vmul.f32 %v1765, %v1766
    %v1768 = vmul.f32 %v1750, %v524
    %v1769 = vsub.f32 %v1767, %v1768
    %v1770 = vld [vmem:[%s4] sm:$0xf]
    %v1772 = vrot.slane %v635, 4
    %vm1774 = vcmask 1043456
    %v1775 = vsel %vm1774, %v1770, %v1772
    %s1776 = scalar_lea.vmem %s6, 576
    %v1777 = vld [vmem:[%s1776] sm:$0xf]
    %v1778 = vld [vmem:[%s1776 + $0x4] sm:$0xf]
    %v1779 = vld [vmem:[%s1776 + $0x8] sm:$0xf]
    %v1780 = vld [vmem:[%s1776 + $0xc] sm:$0xf]
    %v1781 = vld [vmem:[%s1776 + $0x10] sm:$0xf]
    %v1782 = vld [vmem:[%s1776 + $0x14] sm:$0xf]
    %v1783 = vld [vmem:[%s1776 + $0x18] sm:$0xf]
    %v1784 = vld [vmem:[%s1776 + $0x1c] sm:$0xf]
    %v1785 = vld [vmem:[%s1776 + $0x20] sm:$0xf]
    %v1786 = vld [vmem:[%s1776 + $0x24] sm:$0xf]
    %v1787 = vld [vmem:[%s1776 + $0x28] sm:$0xf]
    %v1788 = vld [vmem:[%s1776 + $0x2c] sm:$0xf]
    %v1789 = vld [vmem:[%s1776 + $0x30] sm:$0xf]
    %v1790 = vld [vmem:[%s1776 + $0x34] sm:$0xf]
    %v1791 = vld [vmem:[%s1776 + $0x38] sm:$0xf]
    %v1792 = vld [vmem:[%s1776 + $0x3c] sm:$0xf]
    %v1793 = vpack.c.bf16 %v1775, %v1775
    %v1794 = vld [vmem:[%s7 + $0xd] sm:$0x1]
    %v1795 = vlaneseq
    %v1796 = vshrl.u32 %v1795, 7
    %v1797 = vsub.s32 0, %v1796
    %v1798 = vrot.slane %v1794, %v1797
    %v1815 = vunpack.c.l.b16 %v1777
    %v1816 = vunpack.c.l.b16 %v1778
    %v1817 = vunpack.c.l.b16 %v1779
    %v1818 = vunpack.c.l.b16 %v1780
    %v1819 = vunpack.c.l.b16 %v1781
    %v1820 = vunpack.c.l.b16 %v1782
    %v1821 = vunpack.c.l.b16 %v1783
    %v1822 = vunpack.c.l.b16 %v1784
    %v1823 = vunpack.c.l.b16 %v1785
    %v1824 = vunpack.c.l.b16 %v1786
    %v1825 = vunpack.c.l.b16 %v1787
    %v1826 = vunpack.c.l.b16 %v1788
    %v1827 = vunpack.c.l.b16 %v1789
    %v1828 = vunpack.c.l.b16 %v1790
    %v1829 = vunpack.c.l.b16 %v1791
    %v1830 = vunpack.c.l.b16 %v1792
    %v1831 = vpack.c.b16 %v1816, %v1815
    %v1832 = vpack.c.b16 %v1818, %v1817
    %v1833 = vpack.c.b16 %v1820, %v1819
    %v1834 = vpack.c.b16 %v1822, %v1821
    %v1835 = vpack.c.b16 %v1824, %v1823
    %v1836 = vpack.c.b16 %v1826, %v1825
    %v1837 = vpack.c.b16 %v1828, %v1827
    %v1838 = vpack.c.b16 %v1830, %v1829
    %1847 = vmatprep.subr.bf16.mxu0 0
    %1848 = vmatpush1.bf16.msra.mxu0 %v1831
    %1849 = vmatprep.subr.bf16.mxu0 0
    %1850 = vmatpush1.bf16.msra.mxu0 %v1832
    %1851 = vmatprep.subr.bf16.mxu0 0
    %1852 = vmatpush1.bf16.msra.mxu0 %v1833
    %1853 = vmatprep.subr.bf16.mxu0 0
    %1854 = vmatpush1.bf16.msra.mxu0 %v1834
    %1855 = vmatprep.subr.bf16.mxu0 0
    %1856 = vmatpush1.bf16.msra.mxu0 %v1835
    %1857 = vmatprep.subr.bf16.mxu0 0
    %1858 = vmatpush1.bf16.msra.mxu0 %v1836
    %1859 = vmatprep.subr.bf16.mxu0 0
    %1860 = vmatpush1.bf16.msra.mxu0 %v1837
    %1861 = vmatprep.subr.bf16.mxu0 0
    %1862 = vmatpush1.bf16.msra.mxu0 %v1838
    %1863 = vmatprep.subr.bf16.mxu0 0
    %1864 = vmatpush1.bf16.msra.mxu0 0
    %1865 = vmatprep.subr.bf16.mxu0 0
    %1866 = vmatpush1.bf16.msra.mxu0 0
    %1867 = vmatprep.subr.bf16.mxu0 0
    %1868 = vmatpush1.bf16.msra.mxu0 0
    %1869 = vmatprep.subr.bf16.mxu0 0
    %1870 = vmatpush1.bf16.msra.mxu0 0
    %1871 = vmatprep.subr.bf16.mxu0 0
    %1872 = vmatpush1.bf16.msra.mxu0 0
    %1873 = vmatprep.subr.bf16.mxu0 0
    %1874 = vmatpush1.bf16.msra.mxu0 0
    %1875 = vmatprep.subr.bf16.mxu0 0
    %1876 = vmatpush1.bf16.msra.mxu0 0
    %1877 = vmatprep.subr.bf16.mxu0 0
    %1878 = vmatpush1.bf16.msra.mxu0 0
    %1879 = vmatprep.mubr.bf16.mxu0 0
    %1880 = vmatmul.mubr.bf16.gmra.mrb[0].mxu0 %v1793
    %v1881 = vpop.f32.mrb[0].mxu0
    %v1882 = vadd.f32 %v1798, %v1881
    %v1883 = vpop.f32.mrb[0].mxu0
    %v1884 = vpop.f32.mrb[0].mxu0
    %v1885 = vpop.f32.mrb[0].mxu0
    %1886 = vdwg.mxu0
    %v1887 = vmax.f32 %v1882, 0.0
    %s1888 = scalar_lea.vmem %s6, 640
    %v1889 = vld [vmem:[%s1888] sm:$0xf]
    %v1890 = vld [vmem:[%s1888 + $0x4] sm:$0xf]
    %v1891 = vld [vmem:[%s1888 + $0x8] sm:$0xf]
    %v1892 = vld [vmem:[%s1888 + $0xc] sm:$0xf]
    %v1893 = vld [vmem:[%s1888 + $0x10] sm:$0xf]
    %v1894 = vld [vmem:[%s1888 + $0x14] sm:$0xf]
    %v1895 = vld [vmem:[%s1888 + $0x18] sm:$0xf]
    %v1896 = vld [vmem:[%s1888 + $0x1c] sm:$0xf]
    %v1897 = vld [vmem:[%s1888 + $0x20] sm:$0xf]
    %v1898 = vld [vmem:[%s1888 + $0x24] sm:$0xf]
    %v1899 = vld [vmem:[%s1888 + $0x28] sm:$0xf]
    %v1900 = vld [vmem:[%s1888 + $0x2c] sm:$0xf]
    %v1901 = vld [vmem:[%s1888 + $0x30] sm:$0xf]
    %v1902 = vld [vmem:[%s1888 + $0x34] sm:$0xf]
    %v1903 = vld [vmem:[%s1888 + $0x38] sm:$0xf]
    %v1904 = vld [vmem:[%s1888 + $0x3c] sm:$0xf]
    %v1905 = vpack.c.bf16 %v1887, %v1887
    %v1906 = vld [vmem:[%s7 + $0xe] sm:$0x1]
    %v1907 = vlaneseq
    %v1908 = vshrl.u32 %v1907, 7
    %v1909 = vsub.s32 0, %v1908
    %v1910 = vrot.slane %v1906, %v1909
    %v1927 = vunpack.c.l.b16 %v1889
    %v1928 = vunpack.c.l.b16 %v1890
    %v1929 = vunpack.c.l.b16 %v1891
    %v1930 = vunpack.c.l.b16 %v1892
    %v1931 = vunpack.c.l.b16 %v1893
    %v1932 = vunpack.c.l.b16 %v1894
    %v1933 = vunpack.c.l.b16 %v1895
    %v1934 = vunpack.c.l.b16 %v1896
    %v1935 = vunpack.c.l.b16 %v1897
    %v1936 = vunpack.c.l.b16 %v1898
    %v1937 = vunpack.c.l.b16 %v1899
    %v1938 = vunpack.c.l.b16 %v1900
    %v1939 = vunpack.c.l.b16 %v1901
    %v1940 = vunpack.c.l.b16 %v1902
    %v1941 = vunpack.c.l.b16 %v1903
    %v1942 = vunpack.c.l.b16 %v1904
    %v1943 = vpack.c.b16 %v1928, %v1927
    %v1944 = vpack.c.b16 %v1930, %v1929
    %v1945 = vpack.c.b16 %v1932, %v1931
    %v1946 = vpack.c.b16 %v1934, %v1933
    %v1947 = vpack.c.b16 %v1936, %v1935
    %v1948 = vpack.c.b16 %v1938, %v1937
    %v1949 = vpack.c.b16 %v1940, %v1939
    %v1950 = vpack.c.b16 %v1942, %v1941
    %1959 = vmatprep.subr.bf16.mxu0 0
    %1960 = vmatpush1.bf16.msra.mxu0 %v1943
    %1961 = vmatprep.subr.bf16.mxu0 0
    %1962 = vmatpush1.bf16.msra.mxu0 %v1944
    %1963 = vmatprep.subr.bf16.mxu0 0
    %1964 = vmatpush1.bf16.msra.mxu0 %v1945
    %1965 = vmatprep.subr.bf16.mxu0 0
    %1966 = vmatpush1.bf16.msra.mxu0 %v1946
    %1967 = vmatprep.subr.bf16.mxu0 0
    %1968 = vmatpush1.bf16.msra.mxu0 %v1947
    %1969 = vmatprep.subr.bf16.mxu0 0
    %1970 = vmatpush1.bf16.msra.mxu0 %v1948
    %1971 = vmatprep.subr.bf16.mxu0 0
    %1972 = vmatpush1.bf16.msra.mxu0 %v1949
    %1973 = vmatprep.subr.bf16.mxu0 0
    %1974 = vmatpush1.bf16.msra.mxu0 %v1950
    %1975 = vmatprep.subr.bf16.mxu0 0
    %1976 = vmatpush1.bf16.msra.mxu0 0
    %1977 = vmatprep.subr.bf16.mxu0 0
    %1978 = vmatpush1.bf16.msra.mxu0 0
    %1979 = vmatprep.subr.bf16.mxu0 0
    %1980 = vmatpush1.bf16.msra.mxu0 0
    %1981 = vmatprep.subr.bf16.mxu0 0
    %1982 = vmatpush1.bf16.msra.mxu0 0
    %1983 = vmatprep.subr.bf16.mxu0 0
    %1984 = vmatpush1.bf16.msra.mxu0 0
    %1985 = vmatprep.subr.bf16.mxu0 0
    %1986 = vmatpush1.bf16.msra.mxu0 0
    %1987 = vmatprep.subr.bf16.mxu0 0
    %1988 = vmatpush1.bf16.msra.mxu0 0
    %1989 = vmatprep.subr.bf16.mxu0 0
    %1990 = vmatpush1.bf16.msra.mxu0 0
    %1991 = vmatprep.mubr.bf16.mxu0 0
    %1992 = vmatmul.mubr.bf16.gmra.mrb[0].mxu0 %v1905
    %v1993 = vpop.f32.mrb[0].mxu0
    %v1994 = vadd.f32 %v1910, %v1993
    %v1995 = vpop.f32.mrb[0].mxu0
    %v1996 = vpop.f32.mrb[0].mxu0
    %v1997 = vpop.f32.mrb[0].mxu0
    %1998 = vdwg.mxu0
    %v1999 = vmax.f32 %v1994, 0.0
    %s2000 = scalar_lea.vmem %s6, 704
    %v2001 = vld [vmem:[%s2000] sm:$0xf]
    %v2002 = vld [vmem:[%s2000 + $0x4] sm:$0xf]
    %v2003 = vld [vmem:[%s2000 + $0x8] sm:$0xf]
    %v2004 = vld [vmem:[%s2000 + $0xc] sm:$0xf]
    %v2005 = vld [vmem:[%s2000 + $0x10] sm:$0xf]
    %v2006 = vld [vmem:[%s2000 + $0x14] sm:$0xf]
    %v2007 = vld [vmem:[%s2000 + $0x18] sm:$0xf]
    %v2008 = vld [vmem:[%s2000 + $0x1c] sm:$0xf]
    %v2009 = vld [vmem:[%s2000 + $0x20] sm:$0xf]
    %v2010 = vld [vmem:[%s2000 + $0x24] sm:$0xf]
    %v2011 = vld [vmem:[%s2000 + $0x28] sm:$0xf]
    %v2012 = vld [vmem:[%s2000 + $0x2c] sm:$0xf]
    %v2013 = vld [vmem:[%s2000 + $0x30] sm:$0xf]
    %v2014 = vld [vmem:[%s2000 + $0x34] sm:$0xf]
    %v2015 = vld [vmem:[%s2000 + $0x38] sm:$0xf]
    %v2016 = vld [vmem:[%s2000 + $0x3c] sm:$0xf]
    %v2017 = vpack.c.bf16 %v1999, %v1999
    %v2018 = vld [vmem:[%s7 + $0xf] sm:$0x1]
    %v2019 = vlaneseq
    %v2020 = vshrl.u32 %v2019, 7
    %v2021 = vsub.s32 0, %v2020
    %v2022 = vrot.slane %v2018, %v2021
    %v2039 = vunpack.c.l.b16 %v2001
    %v2040 = vunpack.c.l.b16 %v2002
    %v2041 = vunpack.c.l.b16 %v2003
    %v2042 = vunpack.c.l.b16 %v2004
    %v2043 = vunpack.c.l.b16 %v2005
    %v2044 = vunpack.c.l.b16 %v2006
    %v2045 = vunpack.c.l.b16 %v2007
    %v2046 = vunpack.c.l.b16 %v2008
    %v2047 = vunpack.c.l.b16 %v2009
    %v2048 = vunpack.c.l.b16 %v2010
    %v2049 = vunpack.c.l.b16 %v2011
    %v2050 = vunpack.c.l.b16 %v2012
    %v2051 = vunpack.c.l.b16 %v2013
    %v2052 = vunpack.c.l.b16 %v2014
    %v2053 = vunpack.c.l.b16 %v2015
    %v2054 = vunpack.c.l.b16 %v2016
    %v2055 = vpack.c.b16 %v2040, %v2039
    %v2056 = vpack.c.b16 %v2042, %v2041
    %v2057 = vpack.c.b16 %v2044, %v2043
    %v2058 = vpack.c.b16 %v2046, %v2045
    %v2059 = vpack.c.b16 %v2048, %v2047
    %v2060 = vpack.c.b16 %v2050, %v2049
    %v2061 = vpack.c.b16 %v2052, %v2051
    %v2062 = vpack.c.b16 %v2054, %v2053
    %2071 = vmatprep.subr.bf16.mxu0 0
    %2072 = vmatpush1.bf16.msra.mxu0 %v2055
    %2073 = vmatprep.subr.bf16.mxu0 0
    %2074 = vmatpush1.bf16.msra.mxu0 %v2056
    %2075 = vmatprep.subr.bf16.mxu0 0
    %2076 = vmatpush1.bf16.msra.mxu0 %v2057
    %2077 = vmatprep.subr.bf16.mxu0 0
    %2078 = vmatpush1.bf16.msra.mxu0 %v2058
    %2079 = vmatprep.subr.bf16.mxu0 0
    %2080 = vmatpush1.bf16.msra.mxu0 %v2059
    %2081 = vmatprep.subr.bf16.mxu0 0
    %2082 = vmatpush1.bf16.msra.mxu0 %v2060
    %2083 = vmatprep.subr.bf16.mxu0 0
    %2084 = vmatpush1.bf16.msra.mxu0 %v2061
    %2085 = vmatprep.subr.bf16.mxu0 0
    %2086 = vmatpush1.bf16.msra.mxu0 %v2062
    %2087 = vmatprep.subr.bf16.mxu0 0
    %2088 = vmatpush1.bf16.msra.mxu0 0
    %2089 = vmatprep.subr.bf16.mxu0 0
    %2090 = vmatpush1.bf16.msra.mxu0 0
    %2091 = vmatprep.subr.bf16.mxu0 0
    %2092 = vmatpush1.bf16.msra.mxu0 0
    %2093 = vmatprep.subr.bf16.mxu0 0
    %2094 = vmatpush1.bf16.msra.mxu0 0
    %2095 = vmatprep.subr.bf16.mxu0 0
    %2096 = vmatpush1.bf16.msra.mxu0 0
    %2097 = vmatprep.subr.bf16.mxu0 0
    %2098 = vmatpush1.bf16.msra.mxu0 0
    %2099 = vmatprep.subr.bf16.mxu0 0
    %2100 = vmatpush1.bf16.msra.mxu0 0
    %2101 = vmatprep.subr.bf16.mxu0 0
    %2102 = vmatpush1.bf16.msra.mxu0 0
    %2103 = vmatprep.mubr.bf16.mxu0 0
    %2104 = vmatmul.mubr.bf16.gmra.mrb[0].mxu0 %v2017
    %v2105 = vpop.f32.mrb[0].mxu0
    %v2106 = vadd.f32 %v2022, %v2105
    %v2107 = vpop.f32.mrb[0].mxu0
    %v2108 = vpop.f32.mrb[0].mxu0
    %v2109 = vpop.f32.mrb[0].mxu0
    %2110 = vdwg.mxu0
    %v2111 = vlaneseq
    %v2112 = vshrl.u32 %v2111, 7
    %v2113 = vlaneseq
    %v2114 = vand.u32 %v2113, 127
    %vm2115 = vcmp.eq.s32.totalorder %v2114, 0
    %v2116 = vsel %vm2115, 1, 0
    %v2117 = vcvt.s32.f32 %v2116
    %vm2118 = vcmp.lt.s32.totalorder %v2112, 4
    %v2119 = vsub.f32 0.0, %v2106
    %v2120 = vsel %vm2118, %v2119, %v2106
    %v2121 = vmax.f32 %v2120, 0.0
    %v2122 = vand.u32 2147483647, %v2120
    %v2123 = vsub.f32 0.0, %v2122
    %v2124 = vmul.f32 %v2123, 1.442695
    %v2125 = vpow.pop %v2124
    %v2126 = vadd.f32 %v2125, 1.0
    %v2127 = vlog2.pop %v2126
    %v2128 = vmul.f32 %v2127, 0.6931472
    %v2129 = vmul.f32 -0.5, %v2125
    %v2130 = vadd.f32 %v2129, 1.0
    %v2131 = vmul.f32 %v2130, %v2125
    %v2132 = vand.u32 2147483647, %v2125
    %vm2133 = vcmp.lt.f32.partialorder %v2132, 0.0004427343
    %v2134 = vsel %vm2133, %v2131, %v2128
    %v2135 = vadd.f32 %v2121, %v2134
    %v2136 = vmul.f32 %v2117, %v2135
    %2137 = vadd.xlane.f32.xlu0 %v2136
    %v2138 = vpop.xlane.xlu0 %2137
    %v2139 = vrot.slane %v2138, 4
    %v2140 = vadd.f32 %v2138, %v2139
    %v2141 = vrot.slane %v2140, 2
    %v2142 = vadd.f32 %v2140, %v2141
    %v2143 = vrot.slane %v2142, 1
    %v2144 = vadd.f32 %v2142, %v2143
    %s2145 = vtos %v2144
    %v2146 = vstv %s2145
    %v2147 = vmul.f32 %v2146, 0.1
    %v2148 = vrcp.pop 4.0
    %v2149 = vmul.f32 %v2147, %v2148
    %v2150 = vadd.f32 %v1769, %v2149
    %vm2151 = vcmask 0
    %2152 = vst.msk [vmem:[#allocation3] sm:$0x1] %vm2151, %v2150
    // Predicated region
    $region34: #{gcn_infomax_forward.1} parent=1 // pred_check
      _
    $region35: #{gcn_infomax_forward.1} parent=1 // pred_check_branch
      %2154 = sbr.rel (0) target = $region37
    $region36: #{gcn_infomax_forward.1} parent=1 // pred_region
      %s2156 = ssub.s32 16, 16
      %2157 = vsyncadd [#allocation4], %s2156
      %s2159 = sshll.u32 [#allocation3], 4
      %s2160 = int_to_ptr.vmem [resolvable:$true] %s2159
      %2162 = dma.vmem_to_hbm [thread:$0]  %s2160, 16, %s8, [#allocation4]
    $region37: #{gcn_infomax_forward.1} parent=1 // pred_fallthru
      _
    // Predicated region
    $region38: #{gcn_infomax_forward.1} parent=1 // pred_check
      _
    $region39: #{gcn_infomax_forward.1} parent=1 // pred_check_branch
      %2164 = sbr.rel (0) target = $region41
    $region40: #{gcn_infomax_forward.1} parent=1 // pred_region
      %2165 = dma.done [#allocation4], 16
    $region41: #{gcn_infomax_forward.1} parent=1 // pred_fallthru
      _
    %2166 = vsyncpa [#allocation4], 1

</llo_original>
